<compile_context>
chip_gen: v6e
topology: v6e:2x2x1
jax: 0.10.0
libtpu: 0.0.40
codegen_flags: <defaults>
</compile_context>

<pallas_src>
import jax
import jax.numpy as jnp
from jax.experimental import pallas as pl
from jax.experimental.pallas import tpu as pltpu

# ---- small synthetic config (consistent with the module's __init__) ---------
BATCH = 2
SEQ = 8
HIDDEN = 64
NUM_HEADS = 4
NUM_KV_HEADS = 2
HEAD_DIM = HIDDEN // NUM_HEADS            # 16
HALF = HEAD_DIM // 2                      # 8
REP = NUM_HEADS // NUM_KV_HEADS           # 2
SCALE = HEAD_DIM ** (-0.5)
# attention_dropout = 0.0 -> dropout is identity (eval semantics); nothing to do.

KVW = NUM_KV_HEADS * HEAD_DIM             # 32
QKW = HIDDEN + KVW                        # 96  (all q heads + all k heads)
BS = BATCH * SEQ                          # 16


def llama_attention_kernel(x_ref, cos_ref, sin_ref, wbig_ref, wo_ref,
                           o_ref, acc_ref):
    x = x_ref[...]                                        # (BS, H)

    # One fused, lane-dense projection: columns = [ q | k | v | rotate_half(q|k) ]
    big = jnp.dot(x, wbig_ref[...],
                  preferred_element_type=jnp.float32)     # (BS, 2*QKW + KVW)
    qk = big[:, :QKW]                                     # (BS, 96)  pre-RoPE q||k
    v = big[:, QKW:QKW + KVW]                             # (BS, 32)
    qk_rot = big[:, QKW + KVW:]                           # (BS, 96)  rotate_half(q||k)

    # RoPE for all q and k heads in one vectorized pass (scale already in q).
    qk = qk * cos_ref[...] + qk_rot * sin_ref[...]
    q = qk[:, :HIDDEN]                                    # (BS, 64)
    k = qk[:, HIDDEN:]                                    # (BS, 32)

    # Attention per (batch, head); fully unrolled (tiny shapes), GQA via h//REP.
    for b in range(BATCH):
        r0, r1 = b * SEQ, (b + 1) * SEQ
        for g in range(NUM_KV_HEADS):
            kg = k[r0:r1, g * HEAD_DIM:(g + 1) * HEAD_DIM]        # (S, D)
            vg = v[r0:r1, g * HEAD_DIM:(g + 1) * HEAD_DIM]        # (S, D)
            for rep in range(REP):
                h = g * REP + rep                                 # repeat_kv mapping
                qh = q[r0:r1, h * HEAD_DIM:(h + 1) * HEAD_DIM]    # (S, D)
                # scores = q @ k.T : contract head_dim of both, no explicit .T
                s = jax.lax.dot_general(
                    qh, kg, (((1,), (1,)), ((), ())),
                    preferred_element_type=jnp.float32)           # (S, S)
                s = s - jnp.max(s, axis=-1, keepdims=True)
                p = jnp.exp(s)
                p = p * pl.reciprocal(jnp.sum(p, axis=-1, keepdims=True),
                                      approx=True)
                ctx = jnp.dot(p, vg,
                              preferred_element_type=jnp.float32)  # (S, D)
                acc_ref[r0:r1, h * HEAD_DIM:(h + 1) * HEAD_DIM] = ctx

    # Output projection (weight pre-transposed in the wrapper).
    # TODO(synk): H=64 < 128 lanes -> masked store; at real Llama sizes (H a
    # multiple of 128) this store is naturally lane-dense.
    o_ref[...] = jnp.dot(acc_ref[...], wo_ref[...],
                         preferred_element_type=jnp.float32)


def _rotate_half_cols(w_t):
    """rotate_half applied along the *output-column* axis of a pre-transposed
    projection weight, per head block.  Since rotate_half is a signed
    permutation, x @ _rotate_half_cols(W) == rotate_half(x @ W) exactly."""
    blocks = []
    n_heads = w_t.shape[1] // HEAD_DIM
    for hh in range(n_heads):
        blk = w_t[:, hh * HEAD_DIM:(hh + 1) * HEAD_DIM]
        blocks.append(jnp.concatenate([-blk[:, HALF:], blk[:, :HALF]], axis=1))
    return jnp.concatenate(blocks, axis=1)


@jax.jit
def llama_attention(x, cos, sin, wq, wk, wv, wo):
    B, S, H = x.shape

    # ---- trace-time weight prep (once; no in-kernel transposes) -------------
    wq_t = (wq * SCALE).T                                 # (H, H), scale folded
    wk_t = wk.T                                           # (H, KVW)
    wv_t = wv.T                                           # (H, KVW)
    wqk_t = jnp.concatenate([wq_t, wk_t], axis=1)         # (H, QKW)
    wqk_rot_t = _rotate_half_cols(wqk_t)                  # (H, QKW)
    w_big = jnp.concatenate([wqk_t, wv_t, wqk_rot_t], axis=1)   # (H, 224)
    wo_t = wo.T                                           # (H, H)

    # Fold batch into rows; tile rotary tables to the q||k lane width.
    x2 = x.reshape(B * S, H)
    nrep = NUM_HEADS + NUM_KV_HEADS
    cos_f = jnp.tile(cos.reshape(B * S, HEAD_DIM), (1, nrep))   # (BS, QKW)
    sin_f = jnp.tile(sin.reshape(B * S, HEAD_DIM), (1, nrep))   # (BS, QKW)

    out2 = pl.pallas_call(
        llama_attention_kernel,
        out_shape=jax.ShapeDtypeStruct((B * S, H), jnp.float32),
        grid=(1,),
        in_specs=[
            pl.BlockSpec((B * S, H), lambda i: (0, 0)),
            pl.BlockSpec((B * S, QKW), lambda i: (0, 0)),
            pl.BlockSpec((B * S, QKW), lambda i: (0, 0)),
            pl.BlockSpec(w_big.shape, lambda i: (0, 0)),
            pl.BlockSpec(wo_t.shape, lambda i: (0, 0)),
        ],
        out_specs=pl.BlockSpec((B * S, H), lambda i: (0, 0)),
        scratch_shapes=[pltpu.VMEM((B * S, H), jnp.float32)],
        compiler_params=pltpu.CompilerParams(dimension_semantics=("arbitrary",)),
    )(x2, cos_f, sin_f, w_big, wo_t)
    return out2.reshape(B, S, H)


# ---- pure-JAX reference (mirrors the PyTorch forward) -----------------------
def reference(x, cos, sin, wq, wk, wv, wo):
    B, S, H = x.shape
    q = (x @ wq.T).reshape(B, S, NUM_HEADS, HEAD_DIM)
    k = (x @ wk.T).reshape(B, S, NUM_KV_HEADS, HEAD_DIM)
    v = (x @ wv.T).reshape(B, S, NUM_KV_HEADS, HEAD_DIM)
    c = cos[:, :, None, :]
    s = sin[:, :, None, :]

    def rot(t):
        return jnp.concatenate([-t[..., HALF:], t[..., :HALF]], axis=-1)

    q = q * c + rot(q) * s
    k = k * c + rot(k) * s
    q = jnp.transpose(q, (0, 2, 1, 3))                     # (B, nH, S, D)
    k = jnp.transpose(k, (0, 2, 1, 3))                     # (B, nKV, S, D)
    v = jnp.transpose(v, (0, 2, 1, 3))
    k = jnp.repeat(k, REP, axis=1)
    v = jnp.repeat(v, REP, axis=1)
    w = jnp.einsum('bhqd,bhkd->bhqk', q, k) * SCALE
    w = jax.nn.softmax(w, axis=-1)
    o = jnp.einsum('bhqk,bhkd->bhqd', w, v)
    o = jnp.transpose(o, (0, 2, 1, 3)).reshape(B, S, H)
    return o @ wo.T


if __name__ == "__main__":
    key = jax.random.PRNGKey(0)
    kx, kq, kk, kv, ko = jax.random.split(key, 5)

    x = jax.random.normal(kx, (BATCH, SEQ, HIDDEN), dtype=jnp.float32)

    # deterministic weight init (nn.Linear layout: (out_features, in_features))
    wq = jax.random.normal(kq, (HIDDEN, HIDDEN), dtype=jnp.float32) * 0.05
    wk = jax.random.normal(kk, (NUM_KV_HEADS * HEAD_DIM, HIDDEN), dtype=jnp.float32) * 0.05
    wv = jax.random.normal(kv, (NUM_KV_HEADS * HEAD_DIM, HIDDEN), dtype=jnp.float32) * 0.05
    wo = jax.random.normal(ko, (HIDDEN, HIDDEN), dtype=jnp.float32) * 0.05

    # rotary cos/sin, shape (B, S, HEAD_DIM) as the forward expects
    inv_freq = 1.0 / (10000.0 ** (jnp.arange(0, HEAD_DIM, 2, dtype=jnp.float32) / HEAD_DIM))
    pos = jnp.arange(SEQ, dtype=jnp.float32)
    freqs = pos[:, None] * inv_freq[None, :]               # (S, D/2)
    emb = jnp.concatenate([freqs, freqs], axis=-1)         # (S, D)
    cos = jnp.broadcast_to(jnp.cos(emb)[None], (BATCH, SEQ, HEAD_DIM))
    sin = jnp.broadcast_to(jnp.sin(emb)[None], (BATCH, SEQ, HEAD_DIM))

    out = llama_attention(x, cos, sin, wq, wk, wv, wo)
    out = jax.block_until_ready(out)

    ref = reference(x, cos, sin, wq, wk, wv, wo)
    assert out.shape == (BATCH, SEQ, HIDDEN)
    # tolerance covers the approximate (EUP) reciprocal in the softmax denom
    assert jnp.allclose(out, ref, atol=2e-3, rtol=2e-3), "mismatch vs reference"

    print("KERNEL_OK")
</pallas_src>

<mosaic_0001>
module attributes {stable_mosaic.version = 11 : i64} {
  func.func @llama_attention_kernel(%arg0: i32, %arg1: memref<16x64xf32, #tpu.memory_space<vmem>>, %arg2: memref<16x96xf32, #tpu.memory_space<vmem>>, %arg3: memref<16x96xf32, #tpu.memory_space<vmem>>, %arg4: memref<64x224xf32, #tpu.memory_space<vmem>>, %arg5: memref<64x64xf32, #tpu.memory_space<vmem>>, %arg6: memref<16x64xf32, #tpu.memory_space<vmem>>, %arg7: memref<16x64xf32, #tpu.memory_space<vmem>>) attributes {dimension_semantics = [#tpu.dimension_semantics<arbitrary>], iteration_bounds = array<i64: 1>, scalar_prefetch = 0 : i64, scratch_operands = 1 : i64, tpu.core_type = #tpu.core_type<tc>, window_params = [{pipeline_mode = #tpu.pipeline_mode<synchronous>, transform_indices = @transform_0, window_bounds = array<i64: 16, 64>}, {pipeline_mode = #tpu.pipeline_mode<synchronous>, transform_indices = @transform_1, window_bounds = array<i64: 16, 96>}, {pipeline_mode = #tpu.pipeline_mode<synchronous>, transform_indices = @transform_2, window_bounds = array<i64: 16, 96>}, {pipeline_mode = #tpu.pipeline_mode<synchronous>, transform_indices = @transform_3, window_bounds = array<i64: 64, 224>}, {pipeline_mode = #tpu.pipeline_mode<synchronous>, transform_indices = @transform_4, window_bounds = array<i64: 64, 64>}, {pipeline_mode = #tpu.pipeline_mode<synchronous>, transform_indices = @transform_5, window_bounds = array<i64: 16, 64>}]} {
    %c0 = arith.constant 0 : index
    %c0_0 = arith.constant 0 : index
    %0 = vector.load %arg1[%c0, %c0_0] : memref<16x64xf32, #tpu.memory_space<vmem>>, vector<16x64xf32>
    %c0_1 = arith.constant 0 : index
    %c0_2 = arith.constant 0 : index
    %1 = vector.load %arg4[%c0_1, %c0_2] : memref<64x224xf32, #tpu.memory_space<vmem>>, vector<64x224xf32>
    %cst = arith.constant dense<0.000000e+00> : vector<16x224xf32>
    %2 = tpu.matmul %0, %1, %cst {dimension_numbers = #tpu.dot_dimension_numbers<[1], [0], [0], [1], [0, 0, 1, 1], [], []>} : vector<16x64xf32>, vector<64x224xf32>, vector<16x224xf32> -> vector<16x224xf32>
    %3 = vector.extract_strided_slice %2 {offsets = [0, 0], sizes = [16, 96], strides = [1, 1]} : vector<16x224xf32> to vector<16x96xf32>
    %4 = vector.extract_strided_slice %2 {offsets = [0, 96], sizes = [16, 32], strides = [1, 1]} : vector<16x224xf32> to vector<16x32xf32>
    %5 = vector.extract_strided_slice %2 {offsets = [0, 128], sizes = [16, 96], strides = [1, 1]} : vector<16x224xf32> to vector<16x96xf32>
    %c0_3 = arith.constant 0 : index
    %c0_4 = arith.constant 0 : index
    %6 = vector.load %arg2[%c0_3, %c0_4] : memref<16x96xf32, #tpu.memory_space<vmem>>, vector<16x96xf32>
    %7 = arith.mulf %3, %6 : vector<16x96xf32>
    %c0_5 = arith.constant 0 : index
    %c0_6 = arith.constant 0 : index
    %8 = vector.load %arg3[%c0_5, %c0_6] : memref<16x96xf32, #tpu.memory_space<vmem>>, vector<16x96xf32>
    %9 = arith.mulf %5, %8 : vector<16x96xf32>
    %10 = arith.addf %7, %9 : vector<16x96xf32>
    %11 = vector.extract_strided_slice %10 {offsets = [0, 0], sizes = [16, 64], strides = [1, 1]} : vector<16x96xf32> to vector<16x64xf32>
    %12 = vector.extract_strided_slice %10 {offsets = [0, 64], sizes = [16, 32], strides = [1, 1]} : vector<16x96xf32> to vector<16x32xf32>
    %13 = vector.extract_strided_slice %12 {offsets = [0, 0], sizes = [8, 16], strides = [1, 1]} : vector<16x32xf32> to vector<8x16xf32>
    %14 = vector.extract_strided_slice %4 {offsets = [0, 0], sizes = [8, 16], strides = [1, 1]} : vector<16x32xf32> to vector<8x16xf32>
    %15 = vector.extract_strided_slice %11 {offsets = [0, 0], sizes = [8, 16], strides = [1, 1]} : vector<16x64xf32> to vector<8x16xf32>
    %cst_7 = arith.constant dense<0.000000e+00> : vector<8x8xf32>
    %16 = tpu.matmul %15, %13, %cst_7 {dimension_numbers = #tpu.dot_dimension_numbers<[1], [1], [0], [0], [0, 0, 1, 0], [], []>} : vector<8x16xf32>, vector<8x16xf32>, vector<8x8xf32> -> vector<8x8xf32>
    %cst_8 = arith.constant dense<0xFF800000> : vector<8xf32>
    %17 = vector.multi_reduction <maximumf>, %16, %cst_8 [1] : vector<8x8xf32> to vector<8xf32>
    %18 = vector.shape_cast %17 : vector<8xf32> to vector<8x1xf32>
    %19 = vector.broadcast %18 : vector<8x1xf32> to vector<8x8xf32>
    %20 = arith.subf %16, %19 : vector<8x8xf32>
    %21 = math.exp %20 : vector<8x8xf32>
    %cst_9 = arith.constant dense<0.000000e+00> : vector<8xf32>
    %22 = vector.multi_reduction <add>, %21, %cst_9 [1] : vector<8x8xf32> to vector<8xf32>
    %23 = vector.shape_cast %22 : vector<8xf32> to vector<8x1xf32>
    %24 = tpu.reciprocal %23 {approx = true} : vector<8x1xf32> -> vector<8x1xf32>
    %25 = vector.broadcast %24 : vector<8x1xf32> to vector<8x8xf32>
    %26 = arith.mulf %21, %25 : vector<8x8xf32>
    %cst_10 = arith.constant dense<0.000000e+00> : vector<8x16xf32>
    %27 = tpu.matmul %26, %14, %cst_10 {dimension_numbers = #tpu.dot_dimension_numbers<[1], [0], [0], [1], [0, 0, 1, 1], [], []>} : vector<8x8xf32>, vector<8x16xf32>, vector<8x16xf32> -> vector<8x16xf32>
    %c0_11 = arith.constant 0 : index
    %c0_12 = arith.constant 0 : index
    %28 = vector.load %arg7[%c0_11, %c0_12] : memref<16x64xf32, #tpu.memory_space<vmem>>, vector<8x16xf32>
    tpu.vector_store %arg7[%c0_11, %c0_12], %27 {strides = array<i32>} : memref<16x64xf32, #tpu.memory_space<vmem>>, vector<8x16xf32>,
    %29 = vector.extract_strided_slice %11 {offsets = [0, 16], sizes = [8, 16], strides = [1, 1]} : vector<16x64xf32> to vector<8x16xf32>
    %cst_13 = arith.constant dense<0.000000e+00> : vector<8x8xf32>
    %30 = tpu.matmul %29, %13, %cst_13 {dimension_numbers = #tpu.dot_dimension_numbers<[1], [1], [0], [0], [0, 0, 1, 0], [], []>} : vector<8x16xf32>, vector<8x16xf32>, vector<8x8xf32> -> vector<8x8xf32>
    %cst_14 = arith.constant dense<0xFF800000> : vector<8xf32>
    %31 = vector.multi_reduction <maximumf>, %30, %cst_14 [1] : vector<8x8xf32> to vector<8xf32>
    %32 = vector.shape_cast %31 : vector<8xf32> to vector<8x1xf32>
    %33 = vector.broadcast %32 : vector<8x1xf32> to vector<8x8xf32>
    %34 = arith.subf %30, %33 : vector<8x8xf32>
    %35 = math.exp %34 : vector<8x8xf32>
    %cst_15 = arith.constant dense<0.000000e+00> : vector<8xf32>
    %36 = vector.multi_reduction <add>, %35, %cst_15 [1] : vector<8x8xf32> to vector<8xf32>
    %37 = vector.shape_cast %36 : vector<8xf32> to vector<8x1xf32>
    %38 = tpu.reciprocal %37 {approx = true} : vector<8x1xf32> -> vector<8x1xf32>
    %39 = vector.broadcast %38 : vector<8x1xf32> to vector<8x8xf32>
    %40 = arith.mulf %35, %39 : vector<8x8xf32>
    %cst_16 = arith.constant dense<0.000000e+00> : vector<8x16xf32>
    %41 = tpu.matmul %40, %14, %cst_16 {dimension_numbers = #tpu.dot_dimension_numbers<[1], [0], [0], [1], [0, 0, 1, 1], [], []>} : vector<8x8xf32>, vector<8x16xf32>, vector<8x16xf32> -> vector<8x16xf32>
    %c0_17 = arith.constant 0 : index
    %c16 = arith.constant 16 : index
    %42 = vector.load %arg7[%c0_17, %c16] : memref<16x64xf32, #tpu.memory_space<vmem>>, vector<8x16xf32>
    tpu.vector_store %arg7[%c0_17, %c16], %41 {strides = array<i32>} : memref<16x64xf32, #tpu.memory_space<vmem>>, vector<8x16xf32>,
    %43 = vector.extract_strided_slice %12 {offsets = [0, 16], sizes = [8, 16], strides = [1, 1]} : vector<16x32xf32> to vector<8x16xf32>
    %44 = vector.extract_strided_slice %4 {offsets = [0, 16], sizes = [8, 16], strides = [1, 1]} : vector<16x32xf32> to vector<8x16xf32>
    %45 = vector.extract_strided_slice %11 {offsets = [0, 32], sizes = [8, 16], strides = [1, 1]} : vector<16x64xf32> to vector<8x16xf32>
    %cst_18 = arith.constant dense<0.000000e+00> : vector<8x8xf32>
    %46 = tpu.matmul %45, %43, %cst_18 {dimension_numbers = #tpu.dot_dimension_numbers<[1], [1], [0], [0], [0, 0, 1, 0], [], []>} : vector<8x16xf32>, vector<8x16xf32>, vector<8x8xf32> -> vector<8x8xf32>
    %cst_19 = arith.constant dense<0xFF800000> : vector<8xf32>
    %47 = vector.multi_reduction <maximumf>, %46, %cst_19 [1] : vector<8x8xf32> to vector<8xf32>
    %48 = vector.shape_cast %47 : vector<8xf32> to vector<8x1xf32>
    %49 = vector.broadcast %48 : vector<8x1xf32> to vector<8x8xf32>
    %50 = arith.subf %46, %49 : vector<8x8xf32>
    %51 = math.exp %50 : vector<8x8xf32>
    %cst_20 = arith.constant dense<0.000000e+00> : vector<8xf32>
    %52 = vector.multi_reduction <add>, %51, %cst_20 [1] : vector<8x8xf32> to vector<8xf32>
    %53 = vector.shape_cast %52 : vector<8xf32> to vector<8x1xf32>
    %54 = tpu.reciprocal %53 {approx = true} : vector<8x1xf32> -> vector<8x1xf32>
    %55 = vector.broadcast %54 : vector<8x1xf32> to vector<8x8xf32>
    %56 = arith.mulf %51, %55 : vector<8x8xf32>
    %cst_21 = arith.constant dense<0.000000e+00> : vector<8x16xf32>
    %57 = tpu.matmul %56, %44, %cst_21 {dimension_numbers = #tpu.dot_dimension_numbers<[1], [0], [0], [1], [0, 0, 1, 1], [], []>} : vector<8x8xf32>, vector<8x16xf32>, vector<8x16xf32> -> vector<8x16xf32>
    %c0_22 = arith.constant 0 : index
    %c32 = arith.constant 32 : index
    %58 = vector.load %arg7[%c0_22, %c32] : memref<16x64xf32, #tpu.memory_space<vmem>>, vector<8x16xf32>
    tpu.vector_store %arg7[%c0_22, %c32], %57 {strides = array<i32>} : memref<16x64xf32, #tpu.memory_space<vmem>>, vector<8x16xf32>,
    %59 = vector.extract_strided_slice %11 {offsets = [0, 48], sizes = [8, 16], strides = [1, 1]} : vector<16x64xf32> to vector<8x16xf32>
    %cst_23 = arith.constant dense<0.000000e+00> : vector<8x8xf32>
    %60 = tpu.matmul %59, %43, %cst_23 {dimension_numbers = #tpu.dot_dimension_numbers<[1], [1], [0], [0], [0, 0, 1, 0], [], []>} : vector<8x16xf32>, vector<8x16xf32>, vector<8x8xf32> -> vector<8x8xf32>
    %cst_24 = arith.constant dense<0xFF800000> : vector<8xf32>
    %61 = vector.multi_reduction <maximumf>, %60, %cst_24 [1] : vector<8x8xf32> to vector<8xf32>
    %62 = vector.shape_cast %61 : vector<8xf32> to vector<8x1xf32>
    %63 = vector.broadcast %62 : vector<8x1xf32> to vector<8x8xf32>
    %64 = arith.subf %60, %63 : vector<8x8xf32>
    %65 = math.exp %64 : vector<8x8xf32>
    %cst_25 = arith.constant dense<0.000000e+00> : vector<8xf32>
    %66 = vector.multi_reduction <add>, %65, %cst_25 [1] : vector<8x8xf32> to vector<8xf32>
    %67 = vector.shape_cast %66 : vector<8xf32> to vector<8x1xf32>
    %68 = tpu.reciprocal %67 {approx = true} : vector<8x1xf32> -> vector<8x1xf32>
    %69 = vector.broadcast %68 : vector<8x1xf32> to vector<8x8xf32>
    %70 = arith.mulf %65, %69 : vector<8x8xf32>
    %cst_26 = arith.constant dense<0.000000e+00> : vector<8x16xf32>
    %71 = tpu.matmul %70, %44, %cst_26 {dimension_numbers = #tpu.dot_dimension_numbers<[1], [0], [0], [1], [0, 0, 1, 1], [], []>} : vector<8x8xf32>, vector<8x16xf32>, vector<8x16xf32> -> vector<8x16xf32>
    %c0_27 = arith.constant 0 : index
    %c48 = arith.constant 48 : index
    %72 = vector.load %arg7[%c0_27, %c48] : memref<16x64xf32, #tpu.memory_space<vmem>>, vector<8x16xf32>
    tpu.vector_store %arg7[%c0_27, %c48], %71 {strides = array<i32>} : memref<16x64xf32, #tpu.memory_space<vmem>>, vector<8x16xf32>,
    %73 = vector.extract_strided_slice %12 {offsets = [8, 0], sizes = [8, 16], strides = [1, 1]} : vector<16x32xf32> to vector<8x16xf32>
    %74 = vector.extract_strided_slice %4 {offsets = [8, 0], sizes = [8, 16], strides = [1, 1]} : vector<16x32xf32> to vector<8x16xf32>
    %75 = vector.extract_strided_slice %11 {offsets = [8, 0], sizes = [8, 16], strides = [1, 1]} : vector<16x64xf32> to vector<8x16xf32>
    %cst_28 = arith.constant dense<0.000000e+00> : vector<8x8xf32>
    %76 = tpu.matmul %75, %73, %cst_28 {dimension_numbers = #tpu.dot_dimension_numbers<[1], [1], [0], [0], [0, 0, 1, 0], [], []>} : vector<8x16xf32>, vector<8x16xf32>, vector<8x8xf32> -> vector<8x8xf32>
    %cst_29 = arith.constant dense<0xFF800000> : vector<8xf32>
    %77 = vector.multi_reduction <maximumf>, %76, %cst_29 [1] : vector<8x8xf32> to vector<8xf32>
    %78 = vector.shape_cast %77 : vector<8xf32> to vector<8x1xf32>
    %79 = vector.broadcast %78 : vector<8x1xf32> to vector<8x8xf32>
    %80 = arith.subf %76, %79 : vector<8x8xf32>
    %81 = math.exp %80 : vector<8x8xf32>
    %cst_30 = arith.constant dense<0.000000e+00> : vector<8xf32>
    %82 = vector.multi_reduction <add>, %81, %cst_30 [1] : vector<8x8xf32> to vector<8xf32>
    %83 = vector.shape_cast %82 : vector<8xf32> to vector<8x1xf32>
    %84 = tpu.reciprocal %83 {approx = true} : vector<8x1xf32> -> vector<8x1xf32>
    %85 = vector.broadcast %84 : vector<8x1xf32> to vector<8x8xf32>
    %86 = arith.mulf %81, %85 : vector<8x8xf32>
    %cst_31 = arith.constant dense<0.000000e+00> : vector<8x16xf32>
    %87 = tpu.matmul %86, %74, %cst_31 {dimension_numbers = #tpu.dot_dimension_numbers<[1], [0], [0], [1], [0, 0, 1, 1], [], []>} : vector<8x8xf32>, vector<8x16xf32>, vector<8x16xf32> -> vector<8x16xf32>
    %c8 = arith.constant 8 : index
    %c0_32 = arith.constant 0 : index
    %88 = vector.load %arg7[%c8, %c0_32] : memref<16x64xf32, #tpu.memory_space<vmem>>, vector<8x16xf32>
    tpu.vector_store %arg7[%c8, %c0_32], %87 {strides = array<i32>} : memref<16x64xf32, #tpu.memory_space<vmem>>, vector<8x16xf32>,
    %89 = vector.extract_strided_slice %11 {offsets = [8, 16], sizes = [8, 16], strides = [1, 1]} : vector<16x64xf32> to vector<8x16xf32>
    %cst_33 = arith.constant dense<0.000000e+00> : vector<8x8xf32>
    %90 = tpu.matmul %89, %73, %cst_33 {dimension_numbers = #tpu.dot_dimension_numbers<[1], [1], [0], [0], [0, 0, 1, 0], [], []>} : vector<8x16xf32>, vector<8x16xf32>, vector<8x8xf32> -> vector<8x8xf32>
    %cst_34 = arith.constant dense<0xFF800000> : vector<8xf32>
    %91 = vector.multi_reduction <maximumf>, %90, %cst_34 [1] : vector<8x8xf32> to vector<8xf32>
    %92 = vector.shape_cast %91 : vector<8xf32> to vector<8x1xf32>
    %93 = vector.broadcast %92 : vector<8x1xf32> to vector<8x8xf32>
    %94 = arith.subf %90, %93 : vector<8x8xf32>
    %95 = math.exp %94 : vector<8x8xf32>
    %cst_35 = arith.constant dense<0.000000e+00> : vector<8xf32>
    %96 = vector.multi_reduction <add>, %95, %cst_35 [1] : vector<8x8xf32> to vector<8xf32>
    %97 = vector.shape_cast %96 : vector<8xf32> to vector<8x1xf32>
    %98 = tpu.reciprocal %97 {approx = true} : vector<8x1xf32> -> vector<8x1xf32>
    %99 = vector.broadcast %98 : vector<8x1xf32> to vector<8x8xf32>
    %100 = arith.mulf %95, %99 : vector<8x8xf32>
    %cst_36 = arith.constant dense<0.000000e+00> : vector<8x16xf32>
    %101 = tpu.matmul %100, %74, %cst_36 {dimension_numbers = #tpu.dot_dimension_numbers<[1], [0], [0], [1], [0, 0, 1, 1], [], []>} : vector<8x8xf32>, vector<8x16xf32>, vector<8x16xf32> -> vector<8x16xf32>
    %c8_37 = arith.constant 8 : index
    %c16_38 = arith.constant 16 : index
    %102 = vector.load %arg7[%c8_37, %c16_38] : memref<16x64xf32, #tpu.memory_space<vmem>>, vector<8x16xf32>
    tpu.vector_store %arg7[%c8_37, %c16_38], %101 {strides = array<i32>} : memref<16x64xf32, #tpu.memory_space<vmem>>, vector<8x16xf32>,
    %103 = vector.extract_strided_slice %12 {offsets = [8, 16], sizes = [8, 16], strides = [1, 1]} : vector<16x32xf32> to vector<8x16xf32>
    %104 = vector.extract_strided_slice %4 {offsets = [8, 16], sizes = [8, 16], strides = [1, 1]} : vector<16x32xf32> to vector<8x16xf32>
    %105 = vector.extract_strided_slice %11 {offsets = [8, 32], sizes = [8, 16], strides = [1, 1]} : vector<16x64xf32> to vector<8x16xf32>
    %cst_39 = arith.constant dense<0.000000e+00> : vector<8x8xf32>
    %106 = tpu.matmul %105, %103, %cst_39 {dimension_numbers = #tpu.dot_dimension_numbers<[1], [1], [0], [0], [0, 0, 1, 0], [], []>} : vector<8x16xf32>, vector<8x16xf32>, vector<8x8xf32> -> vector<8x8xf32>
    %cst_40 = arith.constant dense<0xFF800000> : vector<8xf32>
    %107 = vector.multi_reduction <maximumf>, %106, %cst_40 [1] : vector<8x8xf32> to vector<8xf32>
    %108 = vector.shape_cast %107 : vector<8xf32> to vector<8x1xf32>
    %109 = vector.broadcast %108 : vector<8x1xf32> to vector<8x8xf32>
    %110 = arith.subf %106, %109 : vector<8x8xf32>
    %111 = math.exp %110 : vector<8x8xf32>
    %cst_41 = arith.constant dense<0.000000e+00> : vector<8xf32>
    %112 = vector.multi_reduction <add>, %111, %cst_41 [1] : vector<8x8xf32> to vector<8xf32>
    %113 = vector.shape_cast %112 : vector<8xf32> to vector<8x1xf32>
    %114 = tpu.reciprocal %113 {approx = true} : vector<8x1xf32> -> vector<8x1xf32>
    %115 = vector.broadcast %114 : vector<8x1xf32> to vector<8x8xf32>
    %116 = arith.mulf %111, %115 : vector<8x8xf32>
    %cst_42 = arith.constant dense<0.000000e+00> : vector<8x16xf32>
    %117 = tpu.matmul %116, %104, %cst_42 {dimension_numbers = #tpu.dot_dimension_numbers<[1], [0], [0], [1], [0, 0, 1, 1], [], []>} : vector<8x8xf32>, vector<8x16xf32>, vector<8x16xf32> -> vector<8x16xf32>
    %c8_43 = arith.constant 8 : index
    %c32_44 = arith.constant 32 : index
    %118 = vector.load %arg7[%c8_43, %c32_44] : memref<16x64xf32, #tpu.memory_space<vmem>>, vector<8x16xf32>
    tpu.vector_store %arg7[%c8_43, %c32_44], %117 {strides = array<i32>} : memref<16x64xf32, #tpu.memory_space<vmem>>, vector<8x16xf32>,
    %119 = vector.extract_strided_slice %11 {offsets = [8, 48], sizes = [8, 16], strides = [1, 1]} : vector<16x64xf32> to vector<8x16xf32>
    %cst_45 = arith.constant dense<0.000000e+00> : vector<8x8xf32>
    %120 = tpu.matmul %119, %103, %cst_45 {dimension_numbers = #tpu.dot_dimension_numbers<[1], [1], [0], [0], [0, 0, 1, 0], [], []>} : vector<8x16xf32>, vector<8x16xf32>, vector<8x8xf32> -> vector<8x8xf32>
    %cst_46 = arith.constant dense<0xFF800000> : vector<8xf32>
    %121 = vector.multi_reduction <maximumf>, %120, %cst_46 [1] : vector<8x8xf32> to vector<8xf32>
    %122 = vector.shape_cast %121 : vector<8xf32> to vector<8x1xf32>
    %123 = vector.broadcast %122 : vector<8x1xf32> to vector<8x8xf32>
    %124 = arith.subf %120, %123 : vector<8x8xf32>
    %125 = math.exp %124 : vector<8x8xf32>
    %cst_47 = arith.constant dense<0.000000e+00> : vector<8xf32>
    %126 = vector.multi_reduction <add>, %125, %cst_47 [1] : vector<8x8xf32> to vector<8xf32>
    %127 = vector.shape_cast %126 : vector<8xf32> to vector<8x1xf32>
    %128 = tpu.reciprocal %127 {approx = true} : vector<8x1xf32> -> vector<8x1xf32>
    %129 = vector.broadcast %128 : vector<8x1xf32> to vector<8x8xf32>
    %130 = arith.mulf %125, %129 : vector<8x8xf32>
    %cst_48 = arith.constant dense<0.000000e+00> : vector<8x16xf32>
    %131 = tpu.matmul %130, %104, %cst_48 {dimension_numbers = #tpu.dot_dimension_numbers<[1], [0], [0], [1], [0, 0, 1, 1], [], []>} : vector<8x8xf32>, vector<8x16xf32>, vector<8x16xf32> -> vector<8x16xf32>
    %c8_49 = arith.constant 8 : index
    %c48_50 = arith.constant 48 : index
    %132 = vector.load %arg7[%c8_49, %c48_50] : memref<16x64xf32, #tpu.memory_space<vmem>>, vector<8x16xf32>
    tpu.vector_store %arg7[%c8_49, %c48_50], %131 {strides = array<i32>} : memref<16x64xf32, #tpu.memory_space<vmem>>, vector<8x16xf32>,
    %c0_51 = arith.constant 0 : index
    %c0_52 = arith.constant 0 : index
    %133 = vector.load %arg7[%c0_51, %c0_52] : memref<16x64xf32, #tpu.memory_space<vmem>>, vector<16x64xf32>
    %c0_53 = arith.constant 0 : index
    %c0_54 = arith.constant 0 : index
    %134 = vector.load %arg5[%c0_53, %c0_54] : memref<64x64xf32, #tpu.memory_space<vmem>>, vector<64x64xf32>
    %cst_55 = arith.constant dense<0.000000e+00> : vector<16x64xf32>
    %135 = tpu.matmul %133, %134, %cst_55 {dimension_numbers = #tpu.dot_dimension_numbers<[1], [0], [0], [1], [0, 0, 1, 1], [], []>} : vector<16x64xf32>, vector<64x64xf32>, vector<16x64xf32> -> vector<16x64xf32>
    %c0_56 = arith.constant 0 : index
    %c0_57 = arith.constant 0 : index
    %136 = vector.load %arg6[%c0_56, %c0_57] : memref<16x64xf32, #tpu.memory_space<vmem>>, vector<16x64xf32>
    tpu.vector_store %arg6[%c0_56, %c0_57], %135 {strides = array<i32>} : memref<16x64xf32, #tpu.memory_space<vmem>>, vector<16x64xf32>,
    return
  }
  func.func @transform_0(%arg0: i32) -> (i32, i32) {
    %c0_i32 = arith.constant 0 : i32
    %c0_i32_0 = arith.constant 0 : i32
    %c0_i32_1 = arith.constant 0 : i32
    return %c0_i32, %c0_i32_0 : i32, i32
  }
  func.func @transform_1(%arg0: i32) -> (i32, i32) {
    %c0_i32 = arith.constant 0 : i32
    %c0_i32_0 = arith.constant 0 : i32
    %c0_i32_1 = arith.constant 0 : i32
    return %c0_i32, %c0_i32_0 : i32, i32
  }
  func.func @transform_2(%arg0: i32) -> (i32, i32) {
    %c0_i32 = arith.constant 0 : i32
    %c0_i32_0 = arith.constant 0 : i32
    %c0_i32_1 = arith.constant 0 : i32
    return %c0_i32, %c0_i32_0 : i32, i32
  }
  func.func @transform_3(%arg0: i32) -> (i32, i32) {
    %c0_i32 = arith.constant 0 : i32
    %c0_i32_0 = arith.constant 0 : i32
    %c0_i32_1 = arith.constant 0 : i32
    return %c0_i32, %c0_i32_0 : i32, i32
  }
  func.func @transform_4(%arg0: i32) -> (i32, i32) {
    %c0_i32 = arith.constant 0 : i32
    %c0_i32_0 = arith.constant 0 : i32
    %c0_i32_1 = arith.constant 0 : i32
    return %c0_i32, %c0_i32_0 : i32, i32
  }
  func.func @transform_5(%arg0: i32) -> (i32, i32) {
    %c0_i32 = arith.constant 0 : i32
    %c0_i32_0 = arith.constant 0 : i32
    %c0_i32_1 = arith.constant 0 : i32
    return %c0_i32, %c0_i32_0 : i32, i32
  }
}

</mosaic_0001>

<llo_original>
// kernel: tile.11
$region0: #{tile.11}
  %s0 = inlined_call_operand.vmem [shape: f32[16,6,16], index: 0, kind: input, shape index: {}]
  %s1 = inlined_call_operand.vmem [shape: f32[16,96], index: 1, kind: output, shape index: {}]
  %v2 = vld [vmem:[%s0] ss:$8 sm:$0xf]
  %v3 = vld [vmem:[%s0] ss:$8 sm:$0xf0]
  %vm4 = vcmask 1047556
  %v5 = vsel %vm4, %v3, %v2
  %vm6 = vcmask 130048
  %7 = vst.msk [vmem:[%s1] sm:$0xff] %vm6, %v5
  %s8 = scalar_lea.vmem %s0, 64
  %v9 = vld [vmem:[%s8] ss:$8 sm:$0xf]
  %s10 = scalar_lea.vmem %s0, 64
  %v11 = vld [vmem:[%s10] ss:$8 sm:$0xf0]
  %vm12 = vcmask 1047556
  %v13 = vsel %vm12, %v11, %v9
  %vm14 = vcmask 130048
  %s15 = scalar_lea.vmem %s1, 8
  %16 = vst.msk [vmem:[%s15] sm:$0xff] %vm14, %v13
  %s17 = scalar_lea.vmem %s0, 5
  %v18 = vld [vmem:[%s17] ss:$8 sm:$0xf]
  %s19 = scalar_lea.vmem %s0, 5
  %v20 = vld [vmem:[%s19] ss:$8 sm:$0xf0]
  %vm21 = vcmask 1047556
  %v22 = vsel %vm21, %v20, %v18
  %23 = vrot.lane.b32.xlu0 %v22, 80
  %v24 = vpop.permute.xlu0 %23
  %vm25 = vcmask 786048
  %26 = vst.msk [vmem:[%s1] sm:$0xff] %vm25, %v24
  %s27 = scalar_lea.vmem %s0, 69
  %v28 = vld [vmem:[%s27] ss:$8 sm:$0xf]
  %s29 = scalar_lea.vmem %s0, 69
  %v30 = vld [vmem:[%s29] ss:$8 sm:$0xf0]
  %vm31 = vcmask 1047556
  %v32 = vsel %vm31, %v30, %v28
  %33 = vrot.lane.b32.xlu0 %v32, 80
  %v34 = vpop.permute.xlu0 %33
  %vm35 = vcmask 786048
  %s36 = scalar_lea.vmem %s1, 8
  %37 = vst.msk [vmem:[%s36] sm:$0xff] %vm35, %v34
  %s38 = scalar_lea.vmem %s0, 4
  %v39 = vld [vmem:[%s38] ss:$8 sm:$0xf]
  %s40 = scalar_lea.vmem %s0, 4
  %v41 = vld [vmem:[%s40] ss:$8 sm:$0xf0]
  %vm42 = vcmask 1047556
  %v43 = vsel %vm42, %v41, %v39
  %44 = vrot.lane.b32.xlu0 %v43, 64
  %v45 = vpop.permute.xlu0 %44
  %vm46 = vcmask 654848
  %47 = vst.msk [vmem:[%s1] sm:$0xff] %vm46, %v45
  %s48 = scalar_lea.vmem %s0, 68
  %v49 = vld [vmem:[%s48] ss:$8 sm:$0xf]
  %s50 = scalar_lea.vmem %s0, 68
  %v51 = vld [vmem:[%s50] ss:$8 sm:$0xf0]
  %vm52 = vcmask 1047556
  %v53 = vsel %vm52, %v51, %v49
  %54 = vrot.lane.b32.xlu0 %v53, 64
  %v55 = vpop.permute.xlu0 %54
  %vm56 = vcmask 654848
  %s57 = scalar_lea.vmem %s1, 8
  %58 = vst.msk [vmem:[%s57] sm:$0xff] %vm56, %v55
  %s59 = scalar_lea.vmem %s0, 3
  %v60 = vld [vmem:[%s59] ss:$8 sm:$0xf]
  %s61 = scalar_lea.vmem %s0, 3
  %v62 = vld [vmem:[%s61] ss:$8 sm:$0xf0]
  %vm63 = vcmask 1047556
  %v64 = vsel %vm63, %v62, %v60
  %65 = vrot.lane.b32.xlu0 %v64, 48
  %v66 = vpop.permute.xlu0 %65
  %vm67 = vcmask 523648
  %68 = vst.msk [vmem:[%s1] sm:$0xff] %vm67, %v66
  %s69 = scalar_lea.vmem %s0, 67
  %v70 = vld [vmem:[%s69] ss:$8 sm:$0xf]
  %s71 = scalar_lea.vmem %s0, 67
  %v72 = vld [vmem:[%s71] ss:$8 sm:$0xf0]
  %vm73 = vcmask 1047556
  %v74 = vsel %vm73, %v72, %v70
  %75 = vrot.lane.b32.xlu0 %v74, 48
  %v76 = vpop.permute.xlu0 %75
  %vm77 = vcmask 523648
  %s78 = scalar_lea.vmem %s1, 8
  %79 = vst.msk [vmem:[%s78] sm:$0xff] %vm77, %v76
  %s80 = scalar_lea.vmem %s0, 2
  %v81 = vld [vmem:[%s80] ss:$8 sm:$0xf]
  %s82 = scalar_lea.vmem %s0, 2
  %v83 = vld [vmem:[%s82] ss:$8 sm:$0xf0]
  %vm84 = vcmask 1047556
  %v85 = vsel %vm84, %v83, %v81
  %86 = vrot.lane.b32.xlu0 %v85, 32
  %v87 = vpop.permute.xlu0 %86
  %vm88 = vcmask 392448
  %89 = vst.msk [vmem:[%s1] sm:$0xff] %vm88, %v87
  %s90 = scalar_lea.vmem %s0, 66
  %v91 = vld [vmem:[%s90] ss:$8 sm:$0xf]
  %s92 = scalar_lea.vmem %s0, 66
  %v93 = vld [vmem:[%s92] ss:$8 sm:$0xf0]
  %vm94 = vcmask 1047556
  %v95 = vsel %vm94, %v93, %v91
  %96 = vrot.lane.b32.xlu0 %v95, 32
  %v97 = vpop.permute.xlu0 %96
  %vm98 = vcmask 392448
  %s99 = scalar_lea.vmem %s1, 8
  %100 = vst.msk [vmem:[%s99] sm:$0xff] %vm98, %v97
  %s101 = scalar_lea.vmem %s0, 1
  %v102 = vld [vmem:[%s101] ss:$8 sm:$0xf]
  %s103 = scalar_lea.vmem %s0, 1
  %v104 = vld [vmem:[%s103] ss:$8 sm:$0xf0]
  %vm105 = vcmask 1047556
  %v106 = vsel %vm105, %v104, %v102
  %107 = vrot.lane.b32.xlu0 %v106, 16
  %v108 = vpop.permute.xlu0 %107
  %vm109 = vcmask 261248
  %110 = vst.msk [vmem:[%s1] sm:$0xff] %vm109, %v108
  %s111 = scalar_lea.vmem %s0, 65
  %v112 = vld [vmem:[%s111] ss:$8 sm:$0xf]
  %s113 = scalar_lea.vmem %s0, 65
  %v114 = vld [vmem:[%s113] ss:$8 sm:$0xf0]
  %vm115 = vcmask 1047556
  %v116 = vsel %vm115, %v114, %v112
  %117 = vrot.lane.b32.xlu0 %v116, 16
  %v118 = vpop.permute.xlu0 %117
  %vm119 = vcmask 261248
  %s120 = scalar_lea.vmem %s1, 8
  %121 = vst.msk [vmem:[%s120] sm:$0xff] %vm119, %v118

// kernel: llama_attention.1
$region0: #{llama_attention.1}
  #allocation0 [shape = 'u32[]', space=smem, size = 0x4, offset = 0x4, fixed_abs, tag = 'smem constant byte address 0x4 - core index']
  #allocation1 [shape = 'u32[144,128]{1,0:T(1,128)}', space=vmem, size = 0x12000, scoped, tag = 'internal scratch']
  #allocation2 [shape = 'f32[16,64]{1,0:T(8,128)}', space=vmem, size = 0x2000, scoped, tag = 'scratch operand']
  %s0 = inlined_call_operand.vmem [shape: f32[16,64], index: 0, kind: input, shape index: {}]
  %s1 = inlined_call_operand.vmem [shape: f32[16,96], index: 1, kind: input, shape index: {}]
  %s2 = inlined_call_operand.vmem [shape: f32[16,96], index: 2, kind: input, shape index: {}]
  %s3 = inlined_call_operand.vmem [shape: f32[64,224], index: 3, kind: input, shape index: {}]
  %s4 = inlined_call_operand.vmem [shape: f32[64,64], index: 4, kind: input, shape index: {}]
  %s5 = inlined_call_operand.hbm [shape: f32[16,64], index: 5, kind: output, shape index: {}]
  %s6 = sld [smem:[#allocation0]]
  $region30: #{llama_attention.1} parent=0
    _
  %s8 = ssub.s32 1, %s6
  %s9 = scalar_select 0, %s8, %s6
  $region1: #{llama_attention.1} parent=0
    #allocation3 [shape = 'u8[8192]{0}', space=vmem, size = 0x2000, scoped, tag = 'output window, operand 0, single buffered']
    #allocation4 [shape = 's32[1]{0}', space=sflag, size = 0x4, scoped, tag = 'scoped memory for llama_attention.1']
    %10 = vsyncpa [#allocation4], 0
    // Predicated region
    $region2: #{llama_attention.1} parent=1 // pred_check
      _
    $region3: #{llama_attention.1} parent=1 // pred_check_branch
      %12 = sbr.rel (0) target = $region5
    $region4: #{llama_attention.1} parent=1 // pred_region
      _
    $region5: #{llama_attention.1} parent=1 // pred_fallthru
      _
    // Predicated region
    $region6: #{llama_attention.1} parent=1 // pred_check
      _
    $region7: #{llama_attention.1} parent=1 // pred_check_branch
      %14 = sbr.rel (0) target = $region9
    $region8: #{llama_attention.1} parent=1 // pred_region
      _
    $region9: #{llama_attention.1} parent=1 // pred_fallthru
      _
    // Predicated region
    $region10: #{llama_attention.1} parent=1 // pred_check
      _
    $region11: #{llama_attention.1} parent=1 // pred_check_branch
      %16 = sbr.rel (0) target = $region13
    $region12: #{llama_attention.1} parent=1 // pred_region
      _
    $region13: #{llama_attention.1} parent=1 // pred_fallthru
      _
    // Predicated region
    $region14: #{llama_attention.1} parent=1 // pred_check
      _
    $region15: #{llama_attention.1} parent=1 // pred_check_branch
      %18 = sbr.rel (0) target = $region17
    $region16: #{llama_attention.1} parent=1 // pred_region
      _
    $region17: #{llama_attention.1} parent=1 // pred_fallthru
      _
    // Predicated region
    $region18: #{llama_attention.1} parent=1 // pred_check
      _
    $region19: #{llama_attention.1} parent=1 // pred_check_branch
      %20 = sbr.rel (0) target = $region21
    $region20: #{llama_attention.1} parent=1 // pred_region
      _
    $region21: #{llama_attention.1} parent=1 // pred_fallthru
      _
    %v21 = vld [vmem:[%s0] sm:$0xff]
    %v22 = vld [vmem:[%s0 + $0x8] sm:$0xff]
    %v23 = vld [vmem:[%s3] sm:$0xff]
    %v24 = vld [vmem:[%s3 + $0x8] sm:$0xff]
    %v25 = vld [vmem:[%s3 + $0x10] sm:$0xff]
    %v26 = vld [vmem:[%s3 + $0x18] sm:$0xff]
    %v27 = vld [vmem:[%s3 + $0x20] sm:$0xff]
    %v28 = vld [vmem:[%s3 + $0x28] sm:$0xff]
    %v29 = vld [vmem:[%s3 + $0x30] sm:$0xff]
    %v30 = vld [vmem:[%s3 + $0x38] sm:$0xff]
    %v31 = vld [vmem:[%s3 + $0x40] sm:$0xff]
    %v32 = vld [vmem:[%s3 + $0x48] sm:$0xff]
    %v33 = vld [vmem:[%s3 + $0x50] sm:$0xff]
    %v34 = vld [vmem:[%s3 + $0x58] sm:$0xff]
    %v35 = vld [vmem:[%s3 + $0x60] sm:$0xff]
    %v36 = vld [vmem:[%s3 + $0x68] sm:$0xff]
    %v37 = vld [vmem:[%s3 + $0x70] sm:$0xff]
    %v38 = vld [vmem:[%s3 + $0x78] sm:$0xff]
    %vm39 = vcmask 523264
    %v41 = vsel %vm39, %v21, 0
    %v44 = vsel %vm39, %v22, 0
    %46 = vmatprep.subr.mxu0 0.0
    %47 = vmatpush1.msra.mxu0 0.0
    %48 = vmatprep.subr.mxu0 0.0
    %49 = vmatpush1.msra.mxu0 0.0
    %50 = vmatprep.subr.mxu0 0.0
    %51 = vmatpush1.msra.mxu0 0.0
    %52 = vmatprep.subr.mxu0 0.0
    %53 = vmatpush1.msra.mxu0 0.0
    %54 = vmatprep.subr.mxu0 0.0
    %55 = vmatpush1.msra.mxu0 0.0
    %56 = vmatprep.subr.mxu0 0.0
    %57 = vmatpush1.msra.mxu0 0.0
    %58 = vmatprep.subr.mxu0 0.0
    %59 = vmatpush1.msra.mxu0 0.0
    %60 = vmatprep.subr.mxu0 0.0
    %61 = vmatpush1.msra.mxu0 0.0
    %62 = vmatprep.subr.mxu0 %v38
    %63 = vmatpush1.msra.mxu0 %v37
    %64 = vmatprep.subr.mxu0 %v36
    %65 = vmatpush1.msra.mxu0 %v35
    %66 = vmatprep.subr.mxu0 %v34
    %67 = vmatpush1.msra.mxu0 %v33
    %68 = vmatprep.subr.mxu0 %v32
    %69 = vmatpush1.msra.mxu0 %v31
    %70 = vmatprep.subr.mxu0 %v30
    %71 = vmatpush1.msra.mxu0 %v29
    %72 = vmatprep.subr.mxu0 %v28
    %73 = vmatpush1.msra.mxu0 %v27
    %74 = vmatprep.subr.mxu0 %v26
    %75 = vmatpush1.msra.mxu0 %v25
    %76 = vmatprep.subr.mxu0 %v24
    %77 = vmatpush1.msra.mxu0 %v23
    %78 = vmatprep.subr.mxu0 0.0
    %79 = vmatpush2.msra.mxu0 0.0
    %80 = vmatprep.subr.mxu0 0.0
    %81 = vmatpush2.msra.mxu0 0.0
    %82 = vmatprep.subr.mxu0 0.0
    %83 = vmatpush2.msra.mxu0 0.0
    %84 = vmatprep.subr.mxu0 0.0
    %85 = vmatpush2.msra.mxu0 0.0
    %86 = vmatprep.subr.mxu0 0.0
    %87 = vmatpush2.msra.mxu0 0.0
    %88 = vmatprep.subr.mxu0 0.0
    %89 = vmatpush2.msra.mxu0 0.0
    %90 = vmatprep.subr.mxu0 0.0
    %91 = vmatpush2.msra.mxu0 0.0
    %92 = vmatprep.subr.mxu0 0.0
    %93 = vmatpush2.msra.mxu0 0.0
    %94 = vmatprep.subr.mxu0 0.0
    %95 = vmatpush2.msra.mxu0 0.0
    %96 = vmatprep.subr.mxu0 0.0
    %97 = vmatpush2.msra.mxu0 0.0
    %98 = vmatprep.subr.mxu0 0.0
    %99 = vmatpush2.msra.mxu0 0.0
    %100 = vmatprep.subr.mxu0 0.0
    %101 = vmatpush2.msra.mxu0 0.0
    %102 = vmatprep.subr.mxu0 0.0
    %103 = vmatpush2.msra.mxu0 0.0
    %104 = vmatprep.subr.mxu0 0.0
    %105 = vmatpush2.msra.mxu0 0.0
    %106 = vmatprep.subr.mxu0 0.0
    %107 = vmatpush2.msra.mxu0 0.0
    %108 = vmatprep.subr.mxu0 0.0
    %109 = vmatpush2.msra.mxu0 0.0
    %110 = vmatprep.mubr.f32.mxu0 0.0
    %111 = vmatmul.mubr.f32.gmra.mxu0 %v41
    %v112 = vpop.f32.mrf.mxu0
    %v113 = vadd.f32 0.0, %v112
    %v114 = vpop.f32.mrf.mxu0
    %v115 = vadd.f32 0.0, %v114
    %116 = vmatprep.mubr.f32.mxu0 0.0
    %117 = vmatmul.mubr.f32.gmra.mxu0 %v44
    %v118 = vpop.f32.mrf.mxu0
    %v119 = vadd.f32 0.0, %v118
    %v120 = vpop.f32.mrf.mxu0
    %v121 = vadd.f32 0.0, %v120
    %122 = vdwg.mxu0
    %v123 = vld [vmem:[%s1] sm:$0xff]
    %v124 = vld [vmem:[%s1 + $0x8] sm:$0xff]
    %v125 = vmul.f32 %v113, %v123
    %v126 = vmul.f32 %v119, %v124
    %v127 = vld [vmem:[%s2] sm:$0xff]
    %v128 = vld [vmem:[%s2 + $0x8] sm:$0xff]
    %v129 = vmul.f32 %v115, %v127
    %v130 = vmul.f32 %v121, %v128
    %v131 = vadd.f32 %v125, %v129
    %v132 = vadd.f32 %v126, %v130
    %134 = vrot.lane.b32.xlu0 %v131, 64
    %v135 = vpop.permute.xlu0 %134
    %vm136 = vcmask 130048
    %v137 = vsel %vm136, %v131, 0
    %v139 = vsel %vm136, %v135, 0
    %141 = vmatprep.subr.mxu0 0.0
    %142 = vmatpush1.xpose.msra.mxu0 0.0
    %143 = vmatprep.subr.mxu0 0.0
    %144 = vmatpush1.xpose.msra.mxu0 0.0
    %145 = vmatprep.subr.mxu0 0.0
    %146 = vmatpush1.xpose.msra.mxu0 0.0
    %147 = vmatprep.subr.mxu0 0.0
    %148 = vmatpush1.xpose.msra.mxu0 0.0
    %149 = vmatprep.subr.mxu0 0.0
    %150 = vmatpush1.xpose.msra.mxu0 0.0
    %151 = vmatprep.subr.mxu0 0.0
    %152 = vmatpush1.xpose.msra.mxu0 0.0
    %153 = vmatprep.subr.mxu0 0.0
    %154 = vmatpush1.xpose.msra.mxu0 0.0
    %155 = vmatprep.subr.mxu0 0.0
    %156 = vmatpush1.xpose.msra.mxu0 0.0
    %157 = vmatprep.subr.mxu0 0.0
    %158 = vmatpush1.xpose.msra.mxu0 0.0
    %159 = vmatprep.subr.mxu0 0.0
    %160 = vmatpush1.xpose.msra.mxu0 0.0
    %161 = vmatprep.subr.mxu0 0.0
    %162 = vmatpush1.xpose.msra.mxu0 0.0
    %163 = vmatprep.subr.mxu0 0.0
    %164 = vmatpush1.xpose.msra.mxu0 0.0
    %165 = vmatprep.subr.mxu0 0.0
    %166 = vmatpush1.xpose.msra.mxu0 0.0
    %167 = vmatprep.subr.mxu0 0.0
    %168 = vmatpush1.xpose.msra.mxu0 0.0
    %169 = vmatprep.subr.mxu0 0.0
    %170 = vmatpush1.xpose.msra.mxu0 0.0
    %171 = vmatprep.subr.mxu0 0.0
    %172 = vmatpush1.xpose.msra.mxu0 %v139
    %173 = vmatprep.subr.mxu0 0.0
    %174 = vmatpush2.xpose.msra.mxu0 0.0
    %175 = vmatprep.subr.mxu0 0.0
    %176 = vmatpush2.xpose.msra.mxu0 0.0
    %177 = vmatprep.subr.mxu0 0.0
    %178 = vmatpush2.xpose.msra.mxu0 0.0
    %179 = vmatprep.subr.mxu0 0.0
    %180 = vmatpush2.xpose.msra.mxu0 0.0
    %181 = vmatprep.subr.mxu0 0.0
    %182 = vmatpush2.xpose.msra.mxu0 0.0
    %183 = vmatprep.subr.mxu0 0.0
    %184 = vmatpush2.xpose.msra.mxu0 0.0
    %185 = vmatprep.subr.mxu0 0.0
    %186 = vmatpush2.xpose.msra.mxu0 0.0
    %187 = vmatprep.subr.mxu0 0.0
    %188 = vmatpush2.xpose.msra.mxu0 0.0
    %189 = vmatprep.subr.mxu0 0.0
    %190 = vmatpush2.xpose.msra.mxu0 0.0
    %191 = vmatprep.subr.mxu0 0.0
    %192 = vmatpush2.xpose.msra.mxu0 0.0
    %193 = vmatprep.subr.mxu0 0.0
    %194 = vmatpush2.xpose.msra.mxu0 0.0
    %195 = vmatprep.subr.mxu0 0.0
    %196 = vmatpush2.xpose.msra.mxu0 0.0
    %197 = vmatprep.subr.mxu0 0.0
    %198 = vmatpush2.xpose.msra.mxu0 0.0
    %199 = vmatprep.subr.mxu0 0.0
    %200 = vmatpush2.xpose.msra.mxu0 0.0
    %201 = vmatprep.subr.mxu0 0.0
    %202 = vmatpush2.xpose.msra.mxu0 0.0
    %203 = vmatprep.subr.mxu0 0.0
    %204 = vmatpush2.xpose.msra.mxu0 0.0
    %205 = vmatprep.mubr.f32.mxu0 0.0
    %206 = vmatmul.mubr.f32.gmra.mxu0 %v137
    %v207 = vpop.f32.mrf.mxu0
    %v208 = vadd.f32 0.0, %v207
    %v209 = vpop.f32.mrf.mxu0
    %210 = vdwg.mxu0
    %vm211 = vcmask 64512
    %v212 = vsel %vm211, %v208, -inf
    %213 = vmax.xlane.f32.xlu0 %v212
    %v214 = vpop.xlane.xlu0 %213
    %v215 = vsub.f32 %v208, %v214
    %v216 = vmul.f32 %v215, 1.442695
    %v217 = vpow.pop %v216
    %v218 = vsel %vm211, %v217, 0.0
    %219 = vadd.xlane.f32.xlu0 %v218
    %v220 = vpop.xlane.xlu0 %219
    %v221 = vrcp.pop %v220
    %v222 = vmul.f32 %v217, %v221
    %224 = vrot.lane.b32.xlu0 %v113, 32
    %v225 = vpop.permute.xlu0 %224
    %v228 = vsel %vm211, %v222, 0
    %230 = vmatprep.subr.mxu0 0.0
    %231 = vmatpush1.msra.mxu0 0.0
    %232 = vmatprep.subr.mxu0 0.0
    %233 = vmatpush1.msra.mxu0 0.0
    %234 = vmatprep.subr.mxu0 0.0
    %235 = vmatpush1.msra.mxu0 0.0
    %236 = vmatprep.subr.mxu0 0.0
    %237 = vmatpush1.msra.mxu0 0.0
    %238 = vmatprep.subr.mxu0 0.0
    %239 = vmatpush1.msra.mxu0 0.0
    %240 = vmatprep.subr.mxu0 0.0
    %241 = vmatpush1.msra.mxu0 0.0
    %242 = vmatprep.subr.mxu0 0.0
    %243 = vmatpush1.msra.mxu0 0.0
    %244 = vmatprep.subr.mxu0 0.0
    %245 = vmatpush1.msra.mxu0 0.0
    %246 = vmatprep.subr.mxu0 0.0
    %247 = vmatpush1.msra.mxu0 0.0
    %248 = vmatprep.subr.mxu0 0.0
    %249 = vmatpush1.msra.mxu0 0.0
    %250 = vmatprep.subr.mxu0 0.0
    %251 = vmatpush1.msra.mxu0 0.0
    %252 = vmatprep.subr.mxu0 0.0
    %253 = vmatpush1.msra.mxu0 0.0
    %254 = vmatprep.subr.mxu0 0.0
    %255 = vmatpush1.msra.mxu0 0.0
    %256 = vmatprep.subr.mxu0 0.0
    %257 = vmatpush1.msra.mxu0 0.0
    %258 = vmatprep.subr.mxu0 0.0
    %259 = vmatpush1.msra.mxu0 0.0
    %260 = vmatprep.subr.mxu0 0.0
    %261 = vmatpush1.msra.mxu0 %v225
    %262 = vmatprep.subr.mxu0 0.0
    %263 = vmatpush2.msra.mxu0 0.0
    %264 = vmatprep.subr.mxu0 0.0
    %265 = vmatpush2.msra.mxu0 0.0
    %266 = vmatprep.subr.mxu0 0.0
    %267 = vmatpush2.msra.mxu0 0.0
    %268 = vmatprep.subr.mxu0 0.0
    %269 = vmatpush2.msra.mxu0 0.0
    %270 = vmatprep.subr.mxu0 0.0
    %271 = vmatpush2.msra.mxu0 0.0
    %272 = vmatprep.subr.mxu0 0.0
    %273 = vmatpush2.msra.mxu0 0.0
    %274 = vmatprep.subr.mxu0 0.0
    %275 = vmatpush2.msra.mxu0 0.0
    %276 = vmatprep.subr.mxu0 0.0
    %277 = vmatpush2.msra.mxu0 0.0
    %278 = vmatprep.subr.mxu0 0.0
    %279 = vmatpush2.msra.mxu0 0.0
    %280 = vmatprep.subr.mxu0 0.0
    %281 = vmatpush2.msra.mxu0 0.0
    %282 = vmatprep.subr.mxu0 0.0
    %283 = vmatpush2.msra.mxu0 0.0
    %284 = vmatprep.subr.mxu0 0.0
    %285 = vmatpush2.msra.mxu0 0.0
    %286 = vmatprep.subr.mxu0 0.0
    %287 = vmatpush2.msra.mxu0 0.0
    %288 = vmatprep.subr.mxu0 0.0
    %289 = vmatpush2.msra.mxu0 0.0
    %290 = vmatprep.subr.mxu0 0.0
    %291 = vmatpush2.msra.mxu0 0.0
    %292 = vmatprep.subr.mxu0 0.0
    %293 = vmatpush2.msra.mxu0 0.0
    %294 = vmatprep.mubr.f32.mxu0 0.0
    %295 = vmatmul.mubr.f32.gmra.mxu0 %v228
    %v296 = vpop.f32.mrf.mxu0
    %v297 = vadd.f32 0.0, %v296
    %v298 = vpop.f32.mrf.mxu0
    %299 = vdwg.mxu0
    %300 = vst.msk [vmem:[#allocation2] sm:$0xff] %vm136, %v297
    %301 = vrot.lane.b32.xlu0 %v131, 112
    %v302 = vpop.permute.xlu0 %301
    %v303 = vsel %vm136, %v302, 0
    %305 = vmatprep.subr.mxu0 0.0
    %306 = vmatpush1.xpose.msra.mxu0 0.0
    %307 = vmatprep.subr.mxu0 0.0
    %308 = vmatpush1.xpose.msra.mxu0 0.0
    %309 = vmatprep.subr.mxu0 0.0
    %310 = vmatpush1.xpose.msra.mxu0 0.0
    %311 = vmatprep.subr.mxu0 0.0
    %312 = vmatpush1.xpose.msra.mxu0 0.0
    %313 = vmatprep.subr.mxu0 0.0
    %314 = vmatpush1.xpose.msra.mxu0 0.0
    %315 = vmatprep.subr.mxu0 0.0
    %316 = vmatpush1.xpose.msra.mxu0 0.0
    %317 = vmatprep.subr.mxu0 0.0
    %318 = vmatpush1.xpose.msra.mxu0 0.0
    %319 = vmatprep.subr.mxu0 0.0
    %320 = vmatpush1.xpose.msra.mxu0 0.0
    %321 = vmatprep.subr.mxu0 0.0
    %322 = vmatpush1.xpose.msra.mxu0 0.0
    %323 = vmatprep.subr.mxu0 0.0
    %324 = vmatpush1.xpose.msra.mxu0 0.0
    %325 = vmatprep.subr.mxu0 0.0
    %326 = vmatpush1.xpose.msra.mxu0 0.0
    %327 = vmatprep.subr.mxu0 0.0
    %328 = vmatpush1.xpose.msra.mxu0 0.0
    %329 = vmatprep.subr.mxu0 0.0
    %330 = vmatpush1.xpose.msra.mxu0 0.0
    %331 = vmatprep.subr.mxu0 0.0
    %332 = vmatpush1.xpose.msra.mxu0 0.0
    %333 = vmatprep.subr.mxu0 0.0
    %334 = vmatpush1.xpose.msra.mxu0 0.0
    %335 = vmatprep.subr.mxu0 0.0
    %336 = vmatpush1.xpose.msra.mxu0 %v139
    %337 = vmatprep.subr.mxu0 0.0
    %338 = vmatpush2.xpose.msra.mxu0 0.0
    %339 = vmatprep.subr.mxu0 0.0
    %340 = vmatpush2.xpose.msra.mxu0 0.0
    %341 = vmatprep.subr.mxu0 0.0
    %342 = vmatpush2.xpose.msra.mxu0 0.0
    %343 = vmatprep.subr.mxu0 0.0
    %344 = vmatpush2.xpose.msra.mxu0 0.0
    %345 = vmatprep.subr.mxu0 0.0
    %346 = vmatpush2.xpose.msra.mxu0 0.0
    %347 = vmatprep.subr.mxu0 0.0
    %348 = vmatpush2.xpose.msra.mxu0 0.0
    %349 = vmatprep.subr.mxu0 0.0
    %350 = vmatpush2.xpose.msra.mxu0 0.0
    %351 = vmatprep.subr.mxu0 0.0
    %352 = vmatpush2.xpose.msra.mxu0 0.0
    %353 = vmatprep.subr.mxu0 0.0
    %354 = vmatpush2.xpose.msra.mxu0 0.0
    %355 = vmatprep.subr.mxu0 0.0
    %356 = vmatpush2.xpose.msra.mxu0 0.0
    %357 = vmatprep.subr.mxu0 0.0
    %358 = vmatpush2.xpose.msra.mxu0 0.0
    %359 = vmatprep.subr.mxu0 0.0
    %360 = vmatpush2.xpose.msra.mxu0 0.0
    %361 = vmatprep.subr.mxu0 0.0
    %362 = vmatpush2.xpose.msra.mxu0 0.0
    %363 = vmatprep.subr.mxu0 0.0
    %364 = vmatpush2.xpose.msra.mxu0 0.0
    %365 = vmatprep.subr.mxu0 0.0
    %366 = vmatpush2.xpose.msra.mxu0 0.0
    %367 = vmatprep.subr.mxu0 0.0
    %368 = vmatpush2.xpose.msra.mxu0 0.0
    %369 = vmatprep.mubr.f32.mxu0 0.0
    %370 = vmatmul.mubr.f32.gmra.mxu0 %v303
    %v371 = vpop.f32.mrf.mxu0
    %v372 = vadd.f32 0.0, %v371
    %v373 = vpop.f32.mrf.mxu0
    %374 = vdwg.mxu0
    %v375 = vsel %vm211, %v372, -inf
    %376 = vmax.xlane.f32.xlu0 %v375
    %v377 = vpop.xlane.xlu0 %376
    %v378 = vsub.f32 %v372, %v377
    %v379 = vmul.f32 %v378, 1.442695
    %v380 = vpow.pop %v379
    %v381 = vsel %vm211, %v380, 0.0
    %382 = vadd.xlane.f32.xlu0 %v381
    %v383 = vpop.xlane.xlu0 %382
    %v384 = vrcp.pop %v383
    %v385 = vmul.f32 %v380, %v384
    %v387 = vsel %vm211, %v385, 0
    %389 = vmatprep.subr.mxu0 0.0
    %390 = vmatpush1.msra.mxu0 0.0
    %391 = vmatprep.subr.mxu0 0.0
    %392 = vmatpush1.msra.mxu0 0.0
    %393 = vmatprep.subr.mxu0 0.0
    %394 = vmatpush1.msra.mxu0 0.0
    %395 = vmatprep.subr.mxu0 0.0
    %396 = vmatpush1.msra.mxu0 0.0
    %397 = vmatprep.subr.mxu0 0.0
    %398 = vmatpush1.msra.mxu0 0.0
    %399 = vmatprep.subr.mxu0 0.0
    %400 = vmatpush1.msra.mxu0 0.0
    %401 = vmatprep.subr.mxu0 0.0
    %402 = vmatpush1.msra.mxu0 0.0
    %403 = vmatprep.subr.mxu0 0.0
    %404 = vmatpush1.msra.mxu0 0.0
    %405 = vmatprep.subr.mxu0 0.0
    %406 = vmatpush1.msra.mxu0 0.0
    %407 = vmatprep.subr.mxu0 0.0
    %408 = vmatpush1.msra.mxu0 0.0
    %409 = vmatprep.subr.mxu0 0.0
    %410 = vmatpush1.msra.mxu0 0.0
    %411 = vmatprep.subr.mxu0 0.0
    %412 = vmatpush1.msra.mxu0 0.0
    %413 = vmatprep.subr.mxu0 0.0
    %414 = vmatpush1.msra.mxu0 0.0
    %415 = vmatprep.subr.mxu0 0.0
    %416 = vmatpush1.msra.mxu0 0.0
    %417 = vmatprep.subr.mxu0 0.0
    %418 = vmatpush1.msra.mxu0 0.0
    %419 = vmatprep.subr.mxu0 0.0
    %420 = vmatpush1.msra.mxu0 %v225
    %421 = vmatprep.subr.mxu0 0.0
    %422 = vmatpush2.msra.mxu0 0.0
    %423 = vmatprep.subr.mxu0 0.0
    %424 = vmatpush2.msra.mxu0 0.0
    %425 = vmatprep.subr.mxu0 0.0
    %426 = vmatpush2.msra.mxu0 0.0
    %427 = vmatprep.subr.mxu0 0.0
    %428 = vmatpush2.msra.mxu0 0.0
    %429 = vmatprep.subr.mxu0 0.0
    %430 = vmatpush2.msra.mxu0 0.0
    %431 = vmatprep.subr.mxu0 0.0
    %432 = vmatpush2.msra.mxu0 0.0
    %433 = vmatprep.subr.mxu0 0.0
    %434 = vmatpush2.msra.mxu0 0.0
    %435 = vmatprep.subr.mxu0 0.0
    %436 = vmatpush2.msra.mxu0 0.0
    %437 = vmatprep.subr.mxu0 0.0
    %438 = vmatpush2.msra.mxu0 0.0
    %439 = vmatprep.subr.mxu0 0.0
    %440 = vmatpush2.msra.mxu0 0.0
    %441 = vmatprep.subr.mxu0 0.0
    %442 = vmatpush2.msra.mxu0 0.0
    %443 = vmatprep.subr.mxu0 0.0
    %444 = vmatpush2.msra.mxu0 0.0
    %445 = vmatprep.subr.mxu0 0.0
    %446 = vmatpush2.msra.mxu0 0.0
    %447 = vmatprep.subr.mxu0 0.0
    %448 = vmatpush2.msra.mxu0 0.0
    %449 = vmatprep.subr.mxu0 0.0
    %450 = vmatpush2.msra.mxu0 0.0
    %451 = vmatprep.subr.mxu0 0.0
    %452 = vmatpush2.msra.mxu0 0.0
    %453 = vmatprep.mubr.f32.mxu0 0.0
    %454 = vmatmul.mubr.f32.gmra.mxu0 %v387
    %v455 = vpop.f32.mrf.mxu0
    %v456 = vadd.f32 0.0, %v455
    %v457 = vpop.f32.mrf.mxu0
    %458 = vdwg.mxu0
    %460 = vrot.lane.b32.xlu0 %v456, 16
    %v461 = vpop.permute.xlu0 %460
    %vm463 = vcmask 261248
    %464 = vst.msk [vmem:[#allocation2] sm:$0xff] %vm463, %v461
    %465 = vrot.lane.b32.xlu0 %v131, 96
    %v466 = vpop.permute.xlu0 %465
    %467 = vrot.lane.b32.xlu0 %v131, 48
    %v468 = vpop.permute.xlu0 %467
    %v469 = vsel %vm136, %v466, 0
    %v471 = vsel %vm136, %v468, 0
    %473 = vmatprep.subr.mxu0 0.0
    %474 = vmatpush1.xpose.msra.mxu0 0.0
    %475 = vmatprep.subr.mxu0 0.0
    %476 = vmatpush1.xpose.msra.mxu0 0.0
    %477 = vmatprep.subr.mxu0 0.0
    %478 = vmatpush1.xpose.msra.mxu0 0.0
    %479 = vmatprep.subr.mxu0 0.0
    %480 = vmatpush1.xpose.msra.mxu0 0.0
    %481 = vmatprep.subr.mxu0 0.0
    %482 = vmatpush1.xpose.msra.mxu0 0.0
    %483 = vmatprep.subr.mxu0 0.0
    %484 = vmatpush1.xpose.msra.mxu0 0.0
    %485 = vmatprep.subr.mxu0 0.0
    %486 = vmatpush1.xpose.msra.mxu0 0.0
    %487 = vmatprep.subr.mxu0 0.0
    %488 = vmatpush1.xpose.msra.mxu0 0.0
    %489 = vmatprep.subr.mxu0 0.0
    %490 = vmatpush1.xpose.msra.mxu0 0.0
    %491 = vmatprep.subr.mxu0 0.0
    %492 = vmatpush1.xpose.msra.mxu0 0.0
    %493 = vmatprep.subr.mxu0 0.0
    %494 = vmatpush1.xpose.msra.mxu0 0.0
    %495 = vmatprep.subr.mxu0 0.0
    %496 = vmatpush1.xpose.msra.mxu0 0.0
    %497 = vmatprep.subr.mxu0 0.0
    %498 = vmatpush1.xpose.msra.mxu0 0.0
    %499 = vmatprep.subr.mxu0 0.0
    %500 = vmatpush1.xpose.msra.mxu0 0.0
    %501 = vmatprep.subr.mxu0 0.0
    %502 = vmatpush1.xpose.msra.mxu0 0.0
    %503 = vmatprep.subr.mxu0 0.0
    %504 = vmatpush1.xpose.msra.mxu0 %v471
    %505 = vmatprep.subr.mxu0 0.0
    %506 = vmatpush2.xpose.msra.mxu0 0.0
    %507 = vmatprep.subr.mxu0 0.0
    %508 = vmatpush2.xpose.msra.mxu0 0.0
    %509 = vmatprep.subr.mxu0 0.0
    %510 = vmatpush2.xpose.msra.mxu0 0.0
    %511 = vmatprep.subr.mxu0 0.0
    %512 = vmatpush2.xpose.msra.mxu0 0.0
    %513 = vmatprep.subr.mxu0 0.0
    %514 = vmatpush2.xpose.msra.mxu0 0.0
    %515 = vmatprep.subr.mxu0 0.0
    %516 = vmatpush2.xpose.msra.mxu0 0.0
    %517 = vmatprep.subr.mxu0 0.0
    %518 = vmatpush2.xpose.msra.mxu0 0.0
    %519 = vmatprep.subr.mxu0 0.0
    %520 = vmatpush2.xpose.msra.mxu0 0.0
    %521 = vmatprep.subr.mxu0 0.0
    %522 = vmatpush2.xpose.msra.mxu0 0.0
    %523 = vmatprep.subr.mxu0 0.0
    %524 = vmatpush2.xpose.msra.mxu0 0.0
    %525 = vmatprep.subr.mxu0 0.0
    %526 = vmatpush2.xpose.msra.mxu0 0.0
    %527 = vmatprep.subr.mxu0 0.0
    %528 = vmatpush2.xpose.msra.mxu0 0.0
    %529 = vmatprep.subr.mxu0 0.0
    %530 = vmatpush2.xpose.msra.mxu0 0.0
    %531 = vmatprep.subr.mxu0 0.0
    %532 = vmatpush2.xpose.msra.mxu0 0.0
    %533 = vmatprep.subr.mxu0 0.0
    %534 = vmatpush2.xpose.msra.mxu0 0.0
    %535 = vmatprep.subr.mxu0 0.0
    %536 = vmatpush2.xpose.msra.mxu0 0.0
    %537 = vmatprep.mubr.f32.mxu0 0.0
    %538 = vmatmul.mubr.f32.gmra.mxu0 %v469
    %v539 = vpop.f32.mrf.mxu0
    %v540 = vadd.f32 0.0, %v539
    %v541 = vpop.f32.mrf.mxu0
    %542 = vdwg.mxu0
    %v543 = vsel %vm211, %v540, -inf
    %544 = vmax.xlane.f32.xlu0 %v543
    %v545 = vpop.xlane.xlu0 %544
    %v546 = vsub.f32 %v540, %v545
    %v547 = vmul.f32 %v546, 1.442695
    %v548 = vpow.pop %v547
    %v549 = vsel %vm211, %v548, 0.0
    %550 = vadd.xlane.f32.xlu0 %v549
    %v551 = vpop.xlane.xlu0 %550
    %v552 = vrcp.pop %v551
    %v553 = vmul.f32 %v548, %v552
    %554 = vrot.lane.b32.xlu0 %v113, 16
    %v555 = vpop.permute.xlu0 %554
    %v558 = vsel %vm211, %v553, 0
    %560 = vmatprep.subr.mxu0 0.0
    %561 = vmatpush1.msra.mxu0 0.0
    %562 = vmatprep.subr.mxu0 0.0
    %563 = vmatpush1.msra.mxu0 0.0
    %564 = vmatprep.subr.mxu0 0.0
    %565 = vmatpush1.msra.mxu0 0.0
    %566 = vmatprep.subr.mxu0 0.0
    %567 = vmatpush1.msra.mxu0 0.0
    %568 = vmatprep.subr.mxu0 0.0
    %569 = vmatpush1.msra.mxu0 0.0
    %570 = vmatprep.subr.mxu0 0.0
    %571 = vmatpush1.msra.mxu0 0.0
    %572 = vmatprep.subr.mxu0 0.0
    %573 = vmatpush1.msra.mxu0 0.0
    %574 = vmatprep.subr.mxu0 0.0
    %575 = vmatpush1.msra.mxu0 0.0
    %576 = vmatprep.subr.mxu0 0.0
    %577 = vmatpush1.msra.mxu0 0.0
    %578 = vmatprep.subr.mxu0 0.0
    %579 = vmatpush1.msra.mxu0 0.0
    %580 = vmatprep.subr.mxu0 0.0
    %581 = vmatpush1.msra.mxu0 0.0
    %582 = vmatprep.subr.mxu0 0.0
    %583 = vmatpush1.msra.mxu0 0.0
    %584 = vmatprep.subr.mxu0 0.0
    %585 = vmatpush1.msra.mxu0 0.0
    %586 = vmatprep.subr.mxu0 0.0
    %587 = vmatpush1.msra.mxu0 0.0
    %588 = vmatprep.subr.mxu0 0.0
    %589 = vmatpush1.msra.mxu0 0.0
    %590 = vmatprep.subr.mxu0 0.0
    %591 = vmatpush1.msra.mxu0 %v555
    %592 = vmatprep.subr.mxu0 0.0
    %593 = vmatpush2.msra.mxu0 0.0
    %594 = vmatprep.subr.mxu0 0.0
    %595 = vmatpush2.msra.mxu0 0.0
    %596 = vmatprep.subr.mxu0 0.0
    %597 = vmatpush2.msra.mxu0 0.0
    %598 = vmatprep.subr.mxu0 0.0
    %599 = vmatpush2.msra.mxu0 0.0
    %600 = vmatprep.subr.mxu0 0.0
    %601 = vmatpush2.msra.mxu0 0.0
    %602 = vmatprep.subr.mxu0 0.0
    %603 = vmatpush2.msra.mxu0 0.0
    %604 = vmatprep.subr.mxu0 0.0
    %605 = vmatpush2.msra.mxu0 0.0
    %606 = vmatprep.subr.mxu0 0.0
    %607 = vmatpush2.msra.mxu0 0.0
    %608 = vmatprep.subr.mxu0 0.0
    %609 = vmatpush2.msra.mxu0 0.0
    %610 = vmatprep.subr.mxu0 0.0
    %611 = vmatpush2.msra.mxu0 0.0
    %612 = vmatprep.subr.mxu0 0.0
    %613 = vmatpush2.msra.mxu0 0.0
    %614 = vmatprep.subr.mxu0 0.0
    %615 = vmatpush2.msra.mxu0 0.0
    %616 = vmatprep.subr.mxu0 0.0
    %617 = vmatpush2.msra.mxu0 0.0
    %618 = vmatprep.subr.mxu0 0.0
    %619 = vmatpush2.msra.mxu0 0.0
    %620 = vmatprep.subr.mxu0 0.0
    %621 = vmatpush2.msra.mxu0 0.0
    %622 = vmatprep.subr.mxu0 0.0
    %623 = vmatpush2.msra.mxu0 0.0
    %624 = vmatprep.mubr.f32.mxu0 0.0
    %625 = vmatmul.mubr.f32.gmra.mxu0 %v558
    %v626 = vpop.f32.mrf.mxu0
    %v627 = vadd.f32 0.0, %v626
    %v628 = vpop.f32.mrf.mxu0
    %629 = vdwg.mxu0
    %631 = vrot.lane.b32.xlu0 %v627, 32
    %v632 = vpop.permute.xlu0 %631
    %vm634 = vcmask 392448
    %635 = vst.msk [vmem:[#allocation2] sm:$0xff] %vm634, %v632
    %636 = vrot.lane.b32.xlu0 %v131, 80
    %v637 = vpop.permute.xlu0 %636
    %v638 = vsel %vm136, %v637, 0
    %640 = vmatprep.subr.mxu0 0.0
    %641 = vmatpush1.xpose.msra.mxu0 0.0
    %642 = vmatprep.subr.mxu0 0.0
    %643 = vmatpush1.xpose.msra.mxu0 0.0
    %644 = vmatprep.subr.mxu0 0.0
    %645 = vmatpush1.xpose.msra.mxu0 0.0
    %646 = vmatprep.subr.mxu0 0.0
    %647 = vmatpush1.xpose.msra.mxu0 0.0
    %648 = vmatprep.subr.mxu0 0.0
    %649 = vmatpush1.xpose.msra.mxu0 0.0
    %650 = vmatprep.subr.mxu0 0.0
    %651 = vmatpush1.xpose.msra.mxu0 0.0
    %652 = vmatprep.subr.mxu0 0.0
    %653 = vmatpush1.xpose.msra.mxu0 0.0
    %654 = vmatprep.subr.mxu0 0.0
    %655 = vmatpush1.xpose.msra.mxu0 0.0
    %656 = vmatprep.subr.mxu0 0.0
    %657 = vmatpush1.xpose.msra.mxu0 0.0
    %658 = vmatprep.subr.mxu0 0.0
    %659 = vmatpush1.xpose.msra.mxu0 0.0
    %660 = vmatprep.subr.mxu0 0.0
    %661 = vmatpush1.xpose.msra.mxu0 0.0
    %662 = vmatprep.subr.mxu0 0.0
    %663 = vmatpush1.xpose.msra.mxu0 0.0
    %664 = vmatprep.subr.mxu0 0.0
    %665 = vmatpush1.xpose.msra.mxu0 0.0
    %666 = vmatprep.subr.mxu0 0.0
    %667 = vmatpush1.xpose.msra.mxu0 0.0
    %668 = vmatprep.subr.mxu0 0.0
    %669 = vmatpush1.xpose.msra.mxu0 0.0
    %670 = vmatprep.subr.mxu0 0.0
    %671 = vmatpush1.xpose.msra.mxu0 %v471
    %672 = vmatprep.subr.mxu0 0.0
    %673 = vmatpush2.xpose.msra.mxu0 0.0
    %674 = vmatprep.subr.mxu0 0.0
    %675 = vmatpush2.xpose.msra.mxu0 0.0
    %676 = vmatprep.subr.mxu0 0.0
    %677 = vmatpush2.xpose.msra.mxu0 0.0
    %678 = vmatprep.subr.mxu0 0.0
    %679 = vmatpush2.xpose.msra.mxu0 0.0
    %680 = vmatprep.subr.mxu0 0.0
    %681 = vmatpush2.xpose.msra.mxu0 0.0
    %682 = vmatprep.subr.mxu0 0.0
    %683 = vmatpush2.xpose.msra.mxu0 0.0
    %684 = vmatprep.subr.mxu0 0.0
    %685 = vmatpush2.xpose.msra.mxu0 0.0
    %686 = vmatprep.subr.mxu0 0.0
    %687 = vmatpush2.xpose.msra.mxu0 0.0
    %688 = vmatprep.subr.mxu0 0.0
    %689 = vmatpush2.xpose.msra.mxu0 0.0
    %690 = vmatprep.subr.mxu0 0.0
    %691 = vmatpush2.xpose.msra.mxu0 0.0
    %692 = vmatprep.subr.mxu0 0.0
    %693 = vmatpush2.xpose.msra.mxu0 0.0
    %694 = vmatprep.subr.mxu0 0.0
    %695 = vmatpush2.xpose.msra.mxu0 0.0
    %696 = vmatprep.subr.mxu0 0.0
    %697 = vmatpush2.xpose.msra.mxu0 0.0
    %698 = vmatprep.subr.mxu0 0.0
    %699 = vmatpush2.xpose.msra.mxu0 0.0
    %700 = vmatprep.subr.mxu0 0.0
    %701 = vmatpush2.xpose.msra.mxu0 0.0
    %702 = vmatprep.subr.mxu0 0.0
    %703 = vmatpush2.xpose.msra.mxu0 0.0
    %704 = vmatprep.mubr.f32.mxu0 0.0
    %705 = vmatmul.mubr.f32.gmra.mxu0 %v638
    %v706 = vpop.f32.mrf.mxu0
    %v707 = vadd.f32 0.0, %v706
    %v708 = vpop.f32.mrf.mxu0
    %709 = vdwg.mxu0
    %v710 = vsel %vm211, %v707, -inf
    %711 = vmax.xlane.f32.xlu0 %v710
    %v712 = vpop.xlane.xlu0 %711
    %v713 = vsub.f32 %v707, %v712
    %v714 = vmul.f32 %v713, 1.442695
    %v715 = vpow.pop %v714
    %v716 = vsel %vm211, %v715, 0.0
    %717 = vadd.xlane.f32.xlu0 %v716
    %v718 = vpop.xlane.xlu0 %717
    %v719 = vrcp.pop %v718
    %v720 = vmul.f32 %v715, %v719
    %v722 = vsel %vm211, %v720, 0
    %724 = vmatprep.subr.mxu0 0.0
    %725 = vmatpush1.msra.mxu0 0.0
    %726 = vmatprep.subr.mxu0 0.0
    %727 = vmatpush1.msra.mxu0 0.0
    %728 = vmatprep.subr.mxu0 0.0
    %729 = vmatpush1.msra.mxu0 0.0
    %730 = vmatprep.subr.mxu0 0.0
    %731 = vmatpush1.msra.mxu0 0.0
    %732 = vmatprep.subr.mxu0 0.0
    %733 = vmatpush1.msra.mxu0 0.0
    %734 = vmatprep.subr.mxu0 0.0
    %735 = vmatpush1.msra.mxu0 0.0
    %736 = vmatprep.subr.mxu0 0.0
    %737 = vmatpush1.msra.mxu0 0.0
    %738 = vmatprep.subr.mxu0 0.0
    %739 = vmatpush1.msra.mxu0 0.0
    %740 = vmatprep.subr.mxu0 0.0
    %741 = vmatpush1.msra.mxu0 0.0
    %742 = vmatprep.subr.mxu0 0.0
    %743 = vmatpush1.msra.mxu0 0.0
    %744 = vmatprep.subr.mxu0 0.0
    %745 = vmatpush1.msra.mxu0 0.0
    %746 = vmatprep.subr.mxu0 0.0
    %747 = vmatpush1.msra.mxu0 0.0
    %748 = vmatprep.subr.mxu0 0.0
    %749 = vmatpush1.msra.mxu0 0.0
    %750 = vmatprep.subr.mxu0 0.0
    %751 = vmatpush1.msra.mxu0 0.0
    %752 = vmatprep.subr.mxu0 0.0
    %753 = vmatpush1.msra.mxu0 0.0
    %754 = vmatprep.subr.mxu0 0.0
    %755 = vmatpush1.msra.mxu0 %v555
    %756 = vmatprep.subr.mxu0 0.0
    %757 = vmatpush2.msra.mxu0 0.0
    %758 = vmatprep.subr.mxu0 0.0
    %759 = vmatpush2.msra.mxu0 0.0
    %760 = vmatprep.subr.mxu0 0.0
    %761 = vmatpush2.msra.mxu0 0.0
    %762 = vmatprep.subr.mxu0 0.0
    %763 = vmatpush2.msra.mxu0 0.0
    %764 = vmatprep.subr.mxu0 0.0
    %765 = vmatpush2.msra.mxu0 0.0
    %766 = vmatprep.subr.mxu0 0.0
    %767 = vmatpush2.msra.mxu0 0.0
    %768 = vmatprep.subr.mxu0 0.0
    %769 = vmatpush2.msra.mxu0 0.0
    %770 = vmatprep.subr.mxu0 0.0
    %771 = vmatpush2.msra.mxu0 0.0
    %772 = vmatprep.subr.mxu0 0.0
    %773 = vmatpush2.msra.mxu0 0.0
    %774 = vmatprep.subr.mxu0 0.0
    %775 = vmatpush2.msra.mxu0 0.0
    %776 = vmatprep.subr.mxu0 0.0
    %777 = vmatpush2.msra.mxu0 0.0
    %778 = vmatprep.subr.mxu0 0.0
    %779 = vmatpush2.msra.mxu0 0.0
    %780 = vmatprep.subr.mxu0 0.0
    %781 = vmatpush2.msra.mxu0 0.0
    %782 = vmatprep.subr.mxu0 0.0
    %783 = vmatpush2.msra.mxu0 0.0
    %784 = vmatprep.subr.mxu0 0.0
    %785 = vmatpush2.msra.mxu0 0.0
    %786 = vmatprep.subr.mxu0 0.0
    %787 = vmatpush2.msra.mxu0 0.0
    %788 = vmatprep.mubr.f32.mxu0 0.0
    %789 = vmatmul.mubr.f32.gmra.mxu0 %v722
    %v790 = vpop.f32.mrf.mxu0
    %v791 = vadd.f32 0.0, %v790
    %v792 = vpop.f32.mrf.mxu0
    %793 = vdwg.mxu0
    %795 = vrot.lane.b32.xlu0 %v791, 48
    %v796 = vpop.permute.xlu0 %795
    %vm798 = vcmask 523648
    %799 = vst.msk [vmem:[#allocation2] sm:$0xff] %vm798, %v796
    %801 = vrot.lane.b32.xlu0 %v132, 64
    %v802 = vpop.permute.xlu0 %801
    %v803 = vsel %vm136, %v132, 0
    %v805 = vsel %vm136, %v802, 0
    %807 = vmatprep.subr.mxu0 0.0
    %808 = vmatpush1.xpose.msra.mxu0 0.0
    %809 = vmatprep.subr.mxu0 0.0
    %810 = vmatpush1.xpose.msra.mxu0 0.0
    %811 = vmatprep.subr.mxu0 0.0
    %812 = vmatpush1.xpose.msra.mxu0 0.0
    %813 = vmatprep.subr.mxu0 0.0
    %814 = vmatpush1.xpose.msra.mxu0 0.0
    %815 = vmatprep.subr.mxu0 0.0
    %816 = vmatpush1.xpose.msra.mxu0 0.0
    %817 = vmatprep.subr.mxu0 0.0
    %818 = vmatpush1.xpose.msra.mxu0 0.0
    %819 = vmatprep.subr.mxu0 0.0
    %820 = vmatpush1.xpose.msra.mxu0 0.0
    %821 = vmatprep.subr.mxu0 0.0
    %822 = vmatpush1.xpose.msra.mxu0 0.0
    %823 = vmatprep.subr.mxu0 0.0
    %824 = vmatpush1.xpose.msra.mxu0 0.0
    %825 = vmatprep.subr.mxu0 0.0
    %826 = vmatpush1.xpose.msra.mxu0 0.0
    %827 = vmatprep.subr.mxu0 0.0
    %828 = vmatpush1.xpose.msra.mxu0 0.0
    %829 = vmatprep.subr.mxu0 0.0
    %830 = vmatpush1.xpose.msra.mxu0 0.0
    %831 = vmatprep.subr.mxu0 0.0
    %832 = vmatpush1.xpose.msra.mxu0 0.0
    %833 = vmatprep.subr.mxu0 0.0
    %834 = vmatpush1.xpose.msra.mxu0 0.0
    %835 = vmatprep.subr.mxu0 0.0
    %836 = vmatpush1.xpose.msra.mxu0 0.0
    %837 = vmatprep.subr.mxu0 0.0
    %838 = vmatpush1.xpose.msra.mxu0 %v805
    %839 = vmatprep.subr.mxu0 0.0
    %840 = vmatpush2.xpose.msra.mxu0 0.0
    %841 = vmatprep.subr.mxu0 0.0
    %842 = vmatpush2.xpose.msra.mxu0 0.0
    %843 = vmatprep.subr.mxu0 0.0
    %844 = vmatpush2.xpose.msra.mxu0 0.0
    %845 = vmatprep.subr.mxu0 0.0
    %846 = vmatpush2.xpose.msra.mxu0 0.0
    %847 = vmatprep.subr.mxu0 0.0
    %848 = vmatpush2.xpose.msra.mxu0 0.0
    %849 = vmatprep.subr.mxu0 0.0
    %850 = vmatpush2.xpose.msra.mxu0 0.0
    %851 = vmatprep.subr.mxu0 0.0
    %852 = vmatpush2.xpose.msra.mxu0 0.0
    %853 = vmatprep.subr.mxu0 0.0
    %854 = vmatpush2.xpose.msra.mxu0 0.0
    %855 = vmatprep.subr.mxu0 0.0
    %856 = vmatpush2.xpose.msra.mxu0 0.0
    %857 = vmatprep.subr.mxu0 0.0
    %858 = vmatpush2.xpose.msra.mxu0 0.0
    %859 = vmatprep.subr.mxu0 0.0
    %860 = vmatpush2.xpose.msra.mxu0 0.0
    %861 = vmatprep.subr.mxu0 0.0
    %862 = vmatpush2.xpose.msra.mxu0 0.0
    %863 = vmatprep.subr.mxu0 0.0
    %864 = vmatpush2.xpose.msra.mxu0 0.0
    %865 = vmatprep.subr.mxu0 0.0
    %866 = vmatpush2.xpose.msra.mxu0 0.0
    %867 = vmatprep.subr.mxu0 0.0
    %868 = vmatpush2.xpose.msra.mxu0 0.0
    %869 = vmatprep.subr.mxu0 0.0
    %870 = vmatpush2.xpose.msra.mxu0 0.0
    %871 = vmatprep.mubr.f32.mxu0 0.0
    %872 = vmatmul.mubr.f32.gmra.mxu0 %v803
    %v873 = vpop.f32.mrf.mxu0
    %v874 = vadd.f32 0.0, %v873
    %v875 = vpop.f32.mrf.mxu0
    %876 = vdwg.mxu0
    %v877 = vsel %vm211, %v874, -inf
    %878 = vmax.xlane.f32.xlu0 %v877
    %v879 = vpop.xlane.xlu0 %878
    %v880 = vsub.f32 %v874, %v879
    %v881 = vmul.f32 %v880, 1.442695
    %v882 = vpow.pop %v881
    %v883 = vsel %vm211, %v882, 0.0
    %884 = vadd.xlane.f32.xlu0 %v883
    %v885 = vpop.xlane.xlu0 %884
    %v886 = vrcp.pop %v885
    %v887 = vmul.f32 %v882, %v886
    %889 = vrot.lane.b32.xlu0 %v119, 32
    %v890 = vpop.permute.xlu0 %889
    %v893 = vsel %vm211, %v887, 0
    %895 = vmatprep.subr.mxu0 0.0
    %896 = vmatpush1.msra.mxu0 0.0
    %897 = vmatprep.subr.mxu0 0.0
    %898 = vmatpush1.msra.mxu0 0.0
    %899 = vmatprep.subr.mxu0 0.0
    %900 = vmatpush1.msra.mxu0 0.0
    %901 = vmatprep.subr.mxu0 0.0
    %902 = vmatpush1.msra.mxu0 0.0
    %903 = vmatprep.subr.mxu0 0.0
    %904 = vmatpush1.msra.mxu0 0.0
    %905 = vmatprep.subr.mxu0 0.0
    %906 = vmatpush1.msra.mxu0 0.0
    %907 = vmatprep.subr.mxu0 0.0
    %908 = vmatpush1.msra.mxu0 0.0
    %909 = vmatprep.subr.mxu0 0.0
    %910 = vmatpush1.msra.mxu0 0.0
    %911 = vmatprep.subr.mxu0 0.0
    %912 = vmatpush1.msra.mxu0 0.0
    %913 = vmatprep.subr.mxu0 0.0
    %914 = vmatpush1.msra.mxu0 0.0
    %915 = vmatprep.subr.mxu0 0.0
    %916 = vmatpush1.msra.mxu0 0.0
    %917 = vmatprep.subr.mxu0 0.0
    %918 = vmatpush1.msra.mxu0 0.0
    %919 = vmatprep.subr.mxu0 0.0
    %920 = vmatpush1.msra.mxu0 0.0
    %921 = vmatprep.subr.mxu0 0.0
    %922 = vmatpush1.msra.mxu0 0.0
    %923 = vmatprep.subr.mxu0 0.0
    %924 = vmatpush1.msra.mxu0 0.0
    %925 = vmatprep.subr.mxu0 0.0
    %926 = vmatpush1.msra.mxu0 %v890
    %927 = vmatprep.subr.mxu0 0.0
    %928 = vmatpush2.msra.mxu0 0.0
    %929 = vmatprep.subr.mxu0 0.0
    %930 = vmatpush2.msra.mxu0 0.0
    %931 = vmatprep.subr.mxu0 0.0
    %932 = vmatpush2.msra.mxu0 0.0
    %933 = vmatprep.subr.mxu0 0.0
    %934 = vmatpush2.msra.mxu0 0.0
    %935 = vmatprep.subr.mxu0 0.0
    %936 = vmatpush2.msra.mxu0 0.0
    %937 = vmatprep.subr.mxu0 0.0
    %938 = vmatpush2.msra.mxu0 0.0
    %939 = vmatprep.subr.mxu0 0.0
    %940 = vmatpush2.msra.mxu0 0.0
    %941 = vmatprep.subr.mxu0 0.0
    %942 = vmatpush2.msra.mxu0 0.0
    %943 = vmatprep.subr.mxu0 0.0
    %944 = vmatpush2.msra.mxu0 0.0
    %945 = vmatprep.subr.mxu0 0.0
    %946 = vmatpush2.msra.mxu0 0.0
    %947 = vmatprep.subr.mxu0 0.0
    %948 = vmatpush2.msra.mxu0 0.0
    %949 = vmatprep.subr.mxu0 0.0
    %950 = vmatpush2.msra.mxu0 0.0
    %951 = vmatprep.subr.mxu0 0.0
    %952 = vmatpush2.msra.mxu0 0.0
    %953 = vmatprep.subr.mxu0 0.0
    %954 = vmatpush2.msra.mxu0 0.0
    %955 = vmatprep.subr.mxu0 0.0
    %956 = vmatpush2.msra.mxu0 0.0
    %957 = vmatprep.subr.mxu0 0.0
    %958 = vmatpush2.msra.mxu0 0.0
    %959 = vmatprep.mubr.f32.mxu0 0.0
    %960 = vmatmul.mubr.f32.gmra.mxu0 %v893
    %v961 = vpop.f32.mrf.mxu0
    %v962 = vadd.f32 0.0, %v961
    %v963 = vpop.f32.mrf.mxu0
    %964 = vdwg.mxu0
    %965 = vst.msk [vmem:[#allocation2 + $0x8] sm:$0xff] %vm136, %v962
    %966 = vrot.lane.b32.xlu0 %v132, 112
    %v967 = vpop.permute.xlu0 %966
    %v968 = vsel %vm136, %v967, 0
    %970 = vmatprep.subr.mxu0 0.0
    %971 = vmatpush1.xpose.msra.mxu0 0.0
    %972 = vmatprep.subr.mxu0 0.0
    %973 = vmatpush1.xpose.msra.mxu0 0.0
    %974 = vmatprep.subr.mxu0 0.0
    %975 = vmatpush1.xpose.msra.mxu0 0.0
    %976 = vmatprep.subr.mxu0 0.0
    %977 = vmatpush1.xpose.msra.mxu0 0.0
    %978 = vmatprep.subr.mxu0 0.0
    %979 = vmatpush1.xpose.msra.mxu0 0.0
    %980 = vmatprep.subr.mxu0 0.0
    %981 = vmatpush1.xpose.msra.mxu0 0.0
    %982 = vmatprep.subr.mxu0 0.0
    %983 = vmatpush1.xpose.msra.mxu0 0.0
    %984 = vmatprep.subr.mxu0 0.0
    %985 = vmatpush1.xpose.msra.mxu0 0.0
    %986 = vmatprep.subr.mxu0 0.0
    %987 = vmatpush1.xpose.msra.mxu0 0.0
    %988 = vmatprep.subr.mxu0 0.0
    %989 = vmatpush1.xpose.msra.mxu0 0.0
    %990 = vmatprep.subr.mxu0 0.0
    %991 = vmatpush1.xpose.msra.mxu0 0.0
    %992 = vmatprep.subr.mxu0 0.0
    %993 = vmatpush1.xpose.msra.mxu0 0.0
    %994 = vmatprep.subr.mxu0 0.0
    %995 = vmatpush1.xpose.msra.mxu0 0.0
    %996 = vmatprep.subr.mxu0 0.0
    %997 = vmatpush1.xpose.msra.mxu0 0.0
    %998 = vmatprep.subr.mxu0 0.0
    %999 = vmatpush1.xpose.msra.mxu0 0.0
    %1000 = vmatprep.subr.mxu0 0.0
    %1001 = vmatpush1.xpose.msra.mxu0 %v805
    %1002 = vmatprep.subr.mxu0 0.0
    %1003 = vmatpush2.xpose.msra.mxu0 0.0
    %1004 = vmatprep.subr.mxu0 0.0
    %1005 = vmatpush2.xpose.msra.mxu0 0.0
    %1006 = vmatprep.subr.mxu0 0.0
    %1007 = vmatpush2.xpose.msra.mxu0 0.0
    %1008 = vmatprep.subr.mxu0 0.0
    %1009 = vmatpush2.xpose.msra.mxu0 0.0
    %1010 = vmatprep.subr.mxu0 0.0
    %1011 = vmatpush2.xpose.msra.mxu0 0.0
    %1012 = vmatprep.subr.mxu0 0.0
    %1013 = vmatpush2.xpose.msra.mxu0 0.0
    %1014 = vmatprep.subr.mxu0 0.0
    %1015 = vmatpush2.xpose.msra.mxu0 0.0
    %1016 = vmatprep.subr.mxu0 0.0
    %1017 = vmatpush2.xpose.msra.mxu0 0.0
    %1018 = vmatprep.subr.mxu0 0.0
    %1019 = vmatpush2.xpose.msra.mxu0 0.0
    %1020 = vmatprep.subr.mxu0 0.0
    %1021 = vmatpush2.xpose.msra.mxu0 0.0
    %1022 = vmatprep.subr.mxu0 0.0
    %1023 = vmatpush2.xpose.msra.mxu0 0.0
    %1024 = vmatprep.subr.mxu0 0.0
    %1025 = vmatpush2.xpose.msra.mxu0 0.0
    %1026 = vmatprep.subr.mxu0 0.0
    %1027 = vmatpush2.xpose.msra.mxu0 0.0
    %1028 = vmatprep.subr.mxu0 0.0
    %1029 = vmatpush2.xpose.msra.mxu0 0.0
    %1030 = vmatprep.subr.mxu0 0.0
    %1031 = vmatpush2.xpose.msra.mxu0 0.0
    %1032 = vmatprep.subr.mxu0 0.0
    %1033 = vmatpush2.xpose.msra.mxu0 0.0
    %1034 = vmatprep.mubr.f32.mxu0 0.0
    %1035 = vmatmul.mubr.f32.gmra.mxu0 %v968
    %v1036 = vpop.f32.mrf.mxu0
    %v1037 = vadd.f32 0.0, %v1036
    %v1038 = vpop.f32.mrf.mxu0
    %1039 = vdwg.mxu0
    %v1040 = vsel %vm211, %v1037, -inf
    %1041 = vmax.xlane.f32.xlu0 %v1040
    %v1042 = vpop.xlane.xlu0 %1041
    %v1043 = vsub.f32 %v1037, %v1042
    %v1044 = vmul.f32 %v1043, 1.442695
    %v1045 = vpow.pop %v1044
    %v1046 = vsel %vm211, %v1045, 0.0
    %1047 = vadd.xlane.f32.xlu0 %v1046
    %v1048 = vpop.xlane.xlu0 %1047
    %v1049 = vrcp.pop %v1048
    %v1050 = vmul.f32 %v1045, %v1049
    %v1052 = vsel %vm211, %v1050, 0
    %1054 = vmatprep.subr.mxu0 0.0
    %1055 = vmatpush1.msra.mxu0 0.0
    %1056 = vmatprep.subr.mxu0 0.0
    %1057 = vmatpush1.msra.mxu0 0.0
    %1058 = vmatprep.subr.mxu0 0.0
    %1059 = vmatpush1.msra.mxu0 0.0
    %1060 = vmatprep.subr.mxu0 0.0
    %1061 = vmatpush1.msra.mxu0 0.0
    %1062 = vmatprep.subr.mxu0 0.0
    %1063 = vmatpush1.msra.mxu0 0.0
    %1064 = vmatprep.subr.mxu0 0.0
    %1065 = vmatpush1.msra.mxu0 0.0
    %1066 = vmatprep.subr.mxu0 0.0
    %1067 = vmatpush1.msra.mxu0 0.0
    %1068 = vmatprep.subr.mxu0 0.0
    %1069 = vmatpush1.msra.mxu0 0.0
    %1070 = vmatprep.subr.mxu0 0.0
    %1071 = vmatpush1.msra.mxu0 0.0
    %1072 = vmatprep.subr.mxu0 0.0
    %1073 = vmatpush1.msra.mxu0 0.0
    %1074 = vmatprep.subr.mxu0 0.0
    %1075 = vmatpush1.msra.mxu0 0.0
    %1076 = vmatprep.subr.mxu0 0.0
    %1077 = vmatpush1.msra.mxu0 0.0
    %1078 = vmatprep.subr.mxu0 0.0
    %1079 = vmatpush1.msra.mxu0 0.0
    %1080 = vmatprep.subr.mxu0 0.0
    %1081 = vmatpush1.msra.mxu0 0.0
    %1082 = vmatprep.subr.mxu0 0.0
    %1083 = vmatpush1.msra.mxu0 0.0
    %1084 = vmatprep.subr.mxu0 0.0
    %1085 = vmatpush1.msra.mxu0 %v890
    %1086 = vmatprep.subr.mxu0 0.0
    %1087 = vmatpush2.msra.mxu0 0.0
    %1088 = vmatprep.subr.mxu0 0.0
    %1089 = vmatpush2.msra.mxu0 0.0
    %1090 = vmatprep.subr.mxu0 0.0
    %1091 = vmatpush2.msra.mxu0 0.0
    %1092 = vmatprep.subr.mxu0 0.0
    %1093 = vmatpush2.msra.mxu0 0.0
    %1094 = vmatprep.subr.mxu0 0.0
    %1095 = vmatpush2.msra.mxu0 0.0
    %1096 = vmatprep.subr.mxu0 0.0
    %1097 = vmatpush2.msra.mxu0 0.0
    %1098 = vmatprep.subr.mxu0 0.0
    %1099 = vmatpush2.msra.mxu0 0.0
    %1100 = vmatprep.subr.mxu0 0.0
    %1101 = vmatpush2.msra.mxu0 0.0
    %1102 = vmatprep.subr.mxu0 0.0
    %1103 = vmatpush2.msra.mxu0 0.0
    %1104 = vmatprep.subr.mxu0 0.0
    %1105 = vmatpush2.msra.mxu0 0.0
    %1106 = vmatprep.subr.mxu0 0.0
    %1107 = vmatpush2.msra.mxu0 0.0
    %1108 = vmatprep.subr.mxu0 0.0
    %1109 = vmatpush2.msra.mxu0 0.0
    %1110 = vmatprep.subr.mxu0 0.0
    %1111 = vmatpush2.msra.mxu0 0.0
    %1112 = vmatprep.subr.mxu0 0.0
    %1113 = vmatpush2.msra.mxu0 0.0
    %1114 = vmatprep.subr.mxu0 0.0
    %1115 = vmatpush2.msra.mxu0 0.0
    %1116 = vmatprep.subr.mxu0 0.0
    %1117 = vmatpush2.msra.mxu0 0.0
    %1118 = vmatprep.mubr.f32.mxu0 0.0
    %1119 = vmatmul.mubr.f32.gmra.mxu0 %v1052
    %v1120 = vpop.f32.mrf.mxu0
    %v1121 = vadd.f32 0.0, %v1120
    %v1122 = vpop.f32.mrf.mxu0
    %1123 = vdwg.mxu0
    %1125 = vrot.lane.b32.xlu0 %v1121, 16
    %v1126 = vpop.permute.xlu0 %1125
    %1128 = vst.msk [vmem:[#allocation2 + $0x8] sm:$0xff] %vm463, %v1126
    %1129 = vrot.lane.b32.xlu0 %v132, 96
    %v1130 = vpop.permute.xlu0 %1129
    %1131 = vrot.lane.b32.xlu0 %v132, 48
    %v1132 = vpop.permute.xlu0 %1131
    %v1133 = vsel %vm136, %v1130, 0
    %v1135 = vsel %vm136, %v1132, 0
    %1137 = vmatprep.subr.mxu0 0.0
    %1138 = vmatpush1.xpose.msra.mxu0 0.0
    %1139 = vmatprep.subr.mxu0 0.0
    %1140 = vmatpush1.xpose.msra.mxu0 0.0
    %1141 = vmatprep.subr.mxu0 0.0
    %1142 = vmatpush1.xpose.msra.mxu0 0.0
    %1143 = vmatprep.subr.mxu0 0.0
    %1144 = vmatpush1.xpose.msra.mxu0 0.0
    %1145 = vmatprep.subr.mxu0 0.0
    %1146 = vmatpush1.xpose.msra.mxu0 0.0
    %1147 = vmatprep.subr.mxu0 0.0
    %1148 = vmatpush1.xpose.msra.mxu0 0.0
    %1149 = vmatprep.subr.mxu0 0.0
    %1150 = vmatpush1.xpose.msra.mxu0 0.0
    %1151 = vmatprep.subr.mxu0 0.0
    %1152 = vmatpush1.xpose.msra.mxu0 0.0
    %1153 = vmatprep.subr.mxu0 0.0
    %1154 = vmatpush1.xpose.msra.mxu0 0.0
    %1155 = vmatprep.subr.mxu0 0.0
    %1156 = vmatpush1.xpose.msra.mxu0 0.0
    %1157 = vmatprep.subr.mxu0 0.0
    %1158 = vmatpush1.xpose.msra.mxu0 0.0
    %1159 = vmatprep.subr.mxu0 0.0
    %1160 = vmatpush1.xpose.msra.mxu0 0.0
    %1161 = vmatprep.subr.mxu0 0.0
    %1162 = vmatpush1.xpose.msra.mxu0 0.0
    %1163 = vmatprep.subr.mxu0 0.0
    %1164 = vmatpush1.xpose.msra.mxu0 0.0
    %1165 = vmatprep.subr.mxu0 0.0
    %1166 = vmatpush1.xpose.msra.mxu0 0.0
    %1167 = vmatprep.subr.mxu0 0.0
    %1168 = vmatpush1.xpose.msra.mxu0 %v1135
    %1169 = vmatprep.subr.mxu0 0.0
    %1170 = vmatpush2.xpose.msra.mxu0 0.0
    %1171 = vmatprep.subr.mxu0 0.0
    %1172 = vmatpush2.xpose.msra.mxu0 0.0
    %1173 = vmatprep.subr.mxu0 0.0
    %1174 = vmatpush2.xpose.msra.mxu0 0.0
    %1175 = vmatprep.subr.mxu0 0.0
    %1176 = vmatpush2.xpose.msra.mxu0 0.0
    %1177 = vmatprep.subr.mxu0 0.0
    %1178 = vmatpush2.xpose.msra.mxu0 0.0
    %1179 = vmatprep.subr.mxu0 0.0
    %1180 = vmatpush2.xpose.msra.mxu0 0.0
    %1181 = vmatprep.subr.mxu0 0.0
    %1182 = vmatpush2.xpose.msra.mxu0 0.0
    %1183 = vmatprep.subr.mxu0 0.0
    %1184 = vmatpush2.xpose.msra.mxu0 0.0
    %1185 = vmatprep.subr.mxu0 0.0
    %1186 = vmatpush2.xpose.msra.mxu0 0.0
    %1187 = vmatprep.subr.mxu0 0.0
    %1188 = vmatpush2.xpose.msra.mxu0 0.0
    %1189 = vmatprep.subr.mxu0 0.0
    %1190 = vmatpush2.xpose.msra.mxu0 0.0
    %1191 = vmatprep.subr.mxu0 0.0
    %1192 = vmatpush2.xpose.msra.mxu0 0.0
    %1193 = vmatprep.subr.mxu0 0.0
    %1194 = vmatpush2.xpose.msra.mxu0 0.0
    %1195 = vmatprep.subr.mxu0 0.0
    %1196 = vmatpush2.xpose.msra.mxu0 0.0
    %1197 = vmatprep.subr.mxu0 0.0
    %1198 = vmatpush2.xpose.msra.mxu0 0.0
    %1199 = vmatprep.subr.mxu0 0.0
    %1200 = vmatpush2.xpose.msra.mxu0 0.0
    %1201 = vmatprep.mubr.f32.mxu0 0.0
    %1202 = vmatmul.mubr.f32.gmra.mxu0 %v1133
    %v1203 = vpop.f32.mrf.mxu0
    %v1204 = vadd.f32 0.0, %v1203
    %v1205 = vpop.f32.mrf.mxu0
    %1206 = vdwg.mxu0
    %v1207 = vsel %vm211, %v1204, -inf
    %1208 = vmax.xlane.f32.xlu0 %v1207
    %v1209 = vpop.xlane.xlu0 %1208
    %v1210 = vsub.f32 %v1204, %v1209
    %v1211 = vmul.f32 %v1210, 1.442695
    %v1212 = vpow.pop %v1211
    %v1213 = vsel %vm211, %v1212, 0.0
    %1214 = vadd.xlane.f32.xlu0 %v1213
    %v1215 = vpop.xlane.xlu0 %1214
    %v1216 = vrcp.pop %v1215
    %v1217 = vmul.f32 %v1212, %v1216
    %1218 = vrot.lane.b32.xlu0 %v119, 16
    %v1219 = vpop.permute.xlu0 %1218
    %v1222 = vsel %vm211, %v1217, 0
    %1224 = vmatprep.subr.mxu0 0.0
    %1225 = vmatpush1.msra.mxu0 0.0
    %1226 = vmatprep.subr.mxu0 0.0
    %1227 = vmatpush1.msra.mxu0 0.0
    %1228 = vmatprep.subr.mxu0 0.0
    %1229 = vmatpush1.msra.mxu0 0.0
    %1230 = vmatprep.subr.mxu0 0.0
    %1231 = vmatpush1.msra.mxu0 0.0
    %1232 = vmatprep.subr.mxu0 0.0
    %1233 = vmatpush1.msra.mxu0 0.0
    %1234 = vmatprep.subr.mxu0 0.0
    %1235 = vmatpush1.msra.mxu0 0.0
    %1236 = vmatprep.subr.mxu0 0.0
    %1237 = vmatpush1.msra.mxu0 0.0
    %1238 = vmatprep.subr.mxu0 0.0
    %1239 = vmatpush1.msra.mxu0 0.0
    %1240 = vmatprep.subr.mxu0 0.0
    %1241 = vmatpush1.msra.mxu0 0.0
    %1242 = vmatprep.subr.mxu0 0.0
    %1243 = vmatpush1.msra.mxu0 0.0
    %1244 = vmatprep.subr.mxu0 0.0
    %1245 = vmatpush1.msra.mxu0 0.0
    %1246 = vmatprep.subr.mxu0 0.0
    %1247 = vmatpush1.msra.mxu0 0.0
    %1248 = vmatprep.subr.mxu0 0.0
    %1249 = vmatpush1.msra.mxu0 0.0
    %1250 = vmatprep.subr.mxu0 0.0
    %1251 = vmatpush1.msra.mxu0 0.0
    %1252 = vmatprep.subr.mxu0 0.0
    %1253 = vmatpush1.msra.mxu0 0.0
    %1254 = vmatprep.subr.mxu0 0.0
    %1255 = vmatpush1.msra.mxu0 %v1219
    %1256 = vmatprep.subr.mxu0 0.0
    %1257 = vmatpush2.msra.mxu0 0.0
    %1258 = vmatprep.subr.mxu0 0.0
    %1259 = vmatpush2.msra.mxu0 0.0
    %1260 = vmatprep.subr.mxu0 0.0
    %1261 = vmatpush2.msra.mxu0 0.0
    %1262 = vmatprep.subr.mxu0 0.0
    %1263 = vmatpush2.msra.mxu0 0.0
    %1264 = vmatprep.subr.mxu0 0.0
    %1265 = vmatpush2.msra.mxu0 0.0
    %1266 = vmatprep.subr.mxu0 0.0
    %1267 = vmatpush2.msra.mxu0 0.0
    %1268 = vmatprep.subr.mxu0 0.0
    %1269 = vmatpush2.msra.mxu0 0.0
    %1270 = vmatprep.subr.mxu0 0.0
    %1271 = vmatpush2.msra.mxu0 0.0
    %1272 = vmatprep.subr.mxu0 0.0
    %1273 = vmatpush2.msra.mxu0 0.0
    %1274 = vmatprep.subr.mxu0 0.0
    %1275 = vmatpush2.msra.mxu0 0.0
    %1276 = vmatprep.subr.mxu0 0.0
    %1277 = vmatpush2.msra.mxu0 0.0
    %1278 = vmatprep.subr.mxu0 0.0
    %1279 = vmatpush2.msra.mxu0 0.0
    %1280 = vmatprep.subr.mxu0 0.0
    %1281 = vmatpush2.msra.mxu0 0.0
    %1282 = vmatprep.subr.mxu0 0.0
    %1283 = vmatpush2.msra.mxu0 0.0
    %1284 = vmatprep.subr.mxu0 0.0
    %1285 = vmatpush2.msra.mxu0 0.0
    %1286 = vmatprep.subr.mxu0 0.0
    %1287 = vmatpush2.msra.mxu0 0.0
    %1288 = vmatprep.mubr.f32.mxu0 0.0
    %1289 = vmatmul.mubr.f32.gmra.mxu0 %v1222
    %v1290 = vpop.f32.mrf.mxu0
    %v1291 = vadd.f32 0.0, %v1290
    %v1292 = vpop.f32.mrf.mxu0
    %1293 = vdwg.mxu0
    %1295 = vrot.lane.b32.xlu0 %v1291, 32
    %v1296 = vpop.permute.xlu0 %1295
    %1298 = vst.msk [vmem:[#allocation2 + $0x8] sm:$0xff] %vm634, %v1296
    %1299 = vrot.lane.b32.xlu0 %v132, 80
    %v1300 = vpop.permute.xlu0 %1299
    %v1301 = vsel %vm136, %v1300, 0
    %1303 = vmatprep.subr.mxu0 0.0
    %1304 = vmatpush1.xpose.msra.mxu0 0.0
    %1305 = vmatprep.subr.mxu0 0.0
    %1306 = vmatpush1.xpose.msra.mxu0 0.0
    %1307 = vmatprep.subr.mxu0 0.0
    %1308 = vmatpush1.xpose.msra.mxu0 0.0
    %1309 = vmatprep.subr.mxu0 0.0
    %1310 = vmatpush1.xpose.msra.mxu0 0.0
    %1311 = vmatprep.subr.mxu0 0.0
    %1312 = vmatpush1.xpose.msra.mxu0 0.0
    %1313 = vmatprep.subr.mxu0 0.0
    %1314 = vmatpush1.xpose.msra.mxu0 0.0
    %1315 = vmatprep.subr.mxu0 0.0
    %1316 = vmatpush1.xpose.msra.mxu0 0.0
    %1317 = vmatprep.subr.mxu0 0.0
    %1318 = vmatpush1.xpose.msra.mxu0 0.0
    %1319 = vmatprep.subr.mxu0 0.0
    %1320 = vmatpush1.xpose.msra.mxu0 0.0
    %1321 = vmatprep.subr.mxu0 0.0
    %1322 = vmatpush1.xpose.msra.mxu0 0.0
    %1323 = vmatprep.subr.mxu0 0.0
    %1324 = vmatpush1.xpose.msra.mxu0 0.0
    %1325 = vmatprep.subr.mxu0 0.0
    %1326 = vmatpush1.xpose.msra.mxu0 0.0
    %1327 = vmatprep.subr.mxu0 0.0
    %1328 = vmatpush1.xpose.msra.mxu0 0.0
    %1329 = vmatprep.subr.mxu0 0.0
    %1330 = vmatpush1.xpose.msra.mxu0 0.0
    %1331 = vmatprep.subr.mxu0 0.0
    %1332 = vmatpush1.xpose.msra.mxu0 0.0
    %1333 = vmatprep.subr.mxu0 0.0
    %1334 = vmatpush1.xpose.msra.mxu0 %v1135
    %1335 = vmatprep.subr.mxu0 0.0
    %1336 = vmatpush2.xpose.msra.mxu0 0.0
    %1337 = vmatprep.subr.mxu0 0.0
    %1338 = vmatpush2.xpose.msra.mxu0 0.0
    %1339 = vmatprep.subr.mxu0 0.0
    %1340 = vmatpush2.xpose.msra.mxu0 0.0
    %1341 = vmatprep.subr.mxu0 0.0
    %1342 = vmatpush2.xpose.msra.mxu0 0.0
    %1343 = vmatprep.subr.mxu0 0.0
    %1344 = vmatpush2.xpose.msra.mxu0 0.0
    %1345 = vmatprep.subr.mxu0 0.0
    %1346 = vmatpush2.xpose.msra.mxu0 0.0
    %1347 = vmatprep.subr.mxu0 0.0
    %1348 = vmatpush2.xpose.msra.mxu0 0.0
    %1349 = vmatprep.subr.mxu0 0.0
    %1350 = vmatpush2.xpose.msra.mxu0 0.0
    %1351 = vmatprep.subr.mxu0 0.0
    %1352 = vmatpush2.xpose.msra.mxu0 0.0
    %1353 = vmatprep.subr.mxu0 0.0
    %1354 = vmatpush2.xpose.msra.mxu0 0.0
    %1355 = vmatprep.subr.mxu0 0.0
    %1356 = vmatpush2.xpose.msra.mxu0 0.0
    %1357 = vmatprep.subr.mxu0 0.0
    %1358 = vmatpush2.xpose.msra.mxu0 0.0
    %1359 = vmatprep.subr.mxu0 0.0
    %1360 = vmatpush2.xpose.msra.mxu0 0.0
    %1361 = vmatprep.subr.mxu0 0.0
    %1362 = vmatpush2.xpose.msra.mxu0 0.0
    %1363 = vmatprep.subr.mxu0 0.0
    %1364 = vmatpush2.xpose.msra.mxu0 0.0
    %1365 = vmatprep.subr.mxu0 0.0
    %1366 = vmatpush2.xpose.msra.mxu0 0.0
    %1367 = vmatprep.mubr.f32.mxu0 0.0
    %1368 = vmatmul.mubr.f32.gmra.mxu0 %v1301
    %v1369 = vpop.f32.mrf.mxu0
    %v1370 = vadd.f32 0.0, %v1369
    %v1371 = vpop.f32.mrf.mxu0
    %1372 = vdwg.mxu0
    %v1373 = vsel %vm211, %v1370, -inf
    %1374 = vmax.xlane.f32.xlu0 %v1373
    %v1375 = vpop.xlane.xlu0 %1374
    %v1376 = vsub.f32 %v1370, %v1375
    %v1377 = vmul.f32 %v1376, 1.442695
    %v1378 = vpow.pop %v1377
    %v1379 = vsel %vm211, %v1378, 0.0
    %1380 = vadd.xlane.f32.xlu0 %v1379
    %v1381 = vpop.xlane.xlu0 %1380
    %v1382 = vrcp.pop %v1381
    %v1383 = vmul.f32 %v1378, %v1382
    %v1385 = vsel %vm211, %v1383, 0
    %1387 = vmatprep.subr.mxu0 0.0
    %1388 = vmatpush1.msra.mxu0 0.0
    %1389 = vmatprep.subr.mxu0 0.0
    %1390 = vmatpush1.msra.mxu0 0.0
    %1391 = vmatprep.subr.mxu0 0.0
    %1392 = vmatpush1.msra.mxu0 0.0
    %1393 = vmatprep.subr.mxu0 0.0
    %1394 = vmatpush1.msra.mxu0 0.0
    %1395 = vmatprep.subr.mxu0 0.0
    %1396 = vmatpush1.msra.mxu0 0.0
    %1397 = vmatprep.subr.mxu0 0.0
    %1398 = vmatpush1.msra.mxu0 0.0
    %1399 = vmatprep.subr.mxu0 0.0
    %1400 = vmatpush1.msra.mxu0 0.0
    %1401 = vmatprep.subr.mxu0 0.0
    %1402 = vmatpush1.msra.mxu0 0.0
    %1403 = vmatprep.subr.mxu0 0.0
    %1404 = vmatpush1.msra.mxu0 0.0
    %1405 = vmatprep.subr.mxu0 0.0
    %1406 = vmatpush1.msra.mxu0 0.0
    %1407 = vmatprep.subr.mxu0 0.0
    %1408 = vmatpush1.msra.mxu0 0.0
    %1409 = vmatprep.subr.mxu0 0.0
    %1410 = vmatpush1.msra.mxu0 0.0
    %1411 = vmatprep.subr.mxu0 0.0
    %1412 = vmatpush1.msra.mxu0 0.0
    %1413 = vmatprep.subr.mxu0 0.0
    %1414 = vmatpush1.msra.mxu0 0.0
    %1415 = vmatprep.subr.mxu0 0.0
    %1416 = vmatpush1.msra.mxu0 0.0
    %1417 = vmatprep.subr.mxu0 0.0
    %1418 = vmatpush1.msra.mxu0 %v1219
    %1419 = vmatprep.subr.mxu0 0.0
    %1420 = vmatpush2.msra.mxu0 0.0
    %1421 = vmatprep.subr.mxu0 0.0
    %1422 = vmatpush2.msra.mxu0 0.0
    %1423 = vmatprep.subr.mxu0 0.0
    %1424 = vmatpush2.msra.mxu0 0.0
    %1425 = vmatprep.subr.mxu0 0.0
    %1426 = vmatpush2.msra.mxu0 0.0
    %1427 = vmatprep.subr.mxu0 0.0
    %1428 = vmatpush2.msra.mxu0 0.0
    %1429 = vmatprep.subr.mxu0 0.0
    %1430 = vmatpush2.msra.mxu0 0.0
    %1431 = vmatprep.subr.mxu0 0.0
    %1432 = vmatpush2.msra.mxu0 0.0
    %1433 = vmatprep.subr.mxu0 0.0
    %1434 = vmatpush2.msra.mxu0 0.0
    %1435 = vmatprep.subr.mxu0 0.0
    %1436 = vmatpush2.msra.mxu0 0.0
    %1437 = vmatprep.subr.mxu0 0.0
    %1438 = vmatpush2.msra.mxu0 0.0
    %1439 = vmatprep.subr.mxu0 0.0
    %1440 = vmatpush2.msra.mxu0 0.0
    %1441 = vmatprep.subr.mxu0 0.0
    %1442 = vmatpush2.msra.mxu0 0.0
    %1443 = vmatprep.subr.mxu0 0.0
    %1444 = vmatpush2.msra.mxu0 0.0
    %1445 = vmatprep.subr.mxu0 0.0
    %1446 = vmatpush2.msra.mxu0 0.0
    %1447 = vmatprep.subr.mxu0 0.0
    %1448 = vmatpush2.msra.mxu0 0.0
    %1449 = vmatprep.subr.mxu0 0.0
    %1450 = vmatpush2.msra.mxu0 0.0
    %1451 = vmatprep.mubr.f32.mxu0 0.0
    %1452 = vmatmul.mubr.f32.gmra.mxu0 %v1385
    %v1453 = vpop.f32.mrf.mxu0
    %v1454 = vadd.f32 0.0, %v1453
    %v1455 = vpop.f32.mrf.mxu0
    %1456 = vdwg.mxu0
    %1458 = vrot.lane.b32.xlu0 %v1454, 48
    %v1459 = vpop.permute.xlu0 %1458
    %1461 = vst.msk [vmem:[#allocation2 + $0x8] sm:$0xff] %vm798, %v1459
    %v1462 = vld [vmem:[#allocation2] sm:$0xff]
    %v1463 = vld [vmem:[#allocation2 + $0x8] sm:$0xff]
    %v1464 = vld [vmem:[%s4] sm:$0xff]
    %v1465 = vld [vmem:[%s4 + $0x8] sm:$0xff]
    %v1466 = vld [vmem:[%s4 + $0x10] sm:$0xff]
    %v1467 = vld [vmem:[%s4 + $0x18] sm:$0xff]
    %v1468 = vld [vmem:[%s4 + $0x20] sm:$0xff]
    %v1469 = vld [vmem:[%s4 + $0x28] sm:$0xff]
    %v1470 = vld [vmem:[%s4 + $0x30] sm:$0xff]
    %v1471 = vld [vmem:[%s4 + $0x38] sm:$0xff]
    %v1473 = vsel %vm39, %v1462, 0
    %v1476 = vsel %vm39, %v1463, 0
    %1478 = vmatprep.subr.mxu0 0.0
    %1479 = vmatpush1.msra.mxu0 0.0
    %1480 = vmatprep.subr.mxu0 0.0
    %1481 = vmatpush1.msra.mxu0 0.0
    %1482 = vmatprep.subr.mxu0 0.0
    %1483 = vmatpush1.msra.mxu0 0.0
    %1484 = vmatprep.subr.mxu0 0.0
    %1485 = vmatpush1.msra.mxu0 0.0
    %1486 = vmatprep.subr.mxu0 0.0
    %1487 = vmatpush1.msra.mxu0 0.0
    %1488 = vmatprep.subr.mxu0 0.0
    %1489 = vmatpush1.msra.mxu0 0.0
    %1490 = vmatprep.subr.mxu0 0.0
    %1491 = vmatpush1.msra.mxu0 0.0
    %1492 = vmatprep.subr.mxu0 0.0
    %1493 = vmatpush1.msra.mxu0 0.0
    %1494 = vmatprep.subr.mxu0 0.0
    %1495 = vmatpush1.msra.mxu0 %v1471
    %1496 = vmatprep.subr.mxu0 0.0
    %1497 = vmatpush1.msra.mxu0 %v1470
    %1498 = vmatprep.subr.mxu0 0.0
    %1499 = vmatpush1.msra.mxu0 %v1469
    %1500 = vmatprep.subr.mxu0 0.0
    %1501 = vmatpush1.msra.mxu0 %v1468
    %1502 = vmatprep.subr.mxu0 0.0
    %1503 = vmatpush1.msra.mxu0 %v1467
    %1504 = vmatprep.subr.mxu0 0.0
    %1505 = vmatpush1.msra.mxu0 %v1466
    %1506 = vmatprep.subr.mxu0 0.0
    %1507 = vmatpush1.msra.mxu0 %v1465
    %1508 = vmatprep.subr.mxu0 0.0
    %1509 = vmatpush1.msra.mxu0 %v1464
    %1510 = vmatprep.subr.mxu0 0.0
    %1511 = vmatpush2.msra.mxu0 0.0
    %1512 = vmatprep.subr.mxu0 0.0
    %1513 = vmatpush2.msra.mxu0 0.0
    %1514 = vmatprep.subr.mxu0 0.0
    %1515 = vmatpush2.msra.mxu0 0.0
    %1516 = vmatprep.subr.mxu0 0.0
    %1517 = vmatpush2.msra.mxu0 0.0
    %1518 = vmatprep.subr.mxu0 0.0
    %1519 = vmatpush2.msra.mxu0 0.0
    %1520 = vmatprep.subr.mxu0 0.0
    %1521 = vmatpush2.msra.mxu0 0.0
    %1522 = vmatprep.subr.mxu0 0.0
    %1523 = vmatpush2.msra.mxu0 0.0
    %1524 = vmatprep.subr.mxu0 0.0
    %1525 = vmatpush2.msra.mxu0 0.0
    %1526 = vmatprep.subr.mxu0 0.0
    %1527 = vmatpush2.msra.mxu0 0.0
    %1528 = vmatprep.subr.mxu0 0.0
    %1529 = vmatpush2.msra.mxu0 0.0
    %1530 = vmatprep.subr.mxu0 0.0
    %1531 = vmatpush2.msra.mxu0 0.0
    %1532 = vmatprep.subr.mxu0 0.0
    %1533 = vmatpush2.msra.mxu0 0.0
    %1534 = vmatprep.subr.mxu0 0.0
    %1535 = vmatpush2.msra.mxu0 0.0
    %1536 = vmatprep.subr.mxu0 0.0
    %1537 = vmatpush2.msra.mxu0 0.0
    %1538 = vmatprep.subr.mxu0 0.0
    %1539 = vmatpush2.msra.mxu0 0.0
    %1540 = vmatprep.subr.mxu0 0.0
    %1541 = vmatpush2.msra.mxu0 0.0
    %1542 = vmatprep.mubr.f32.mxu0 0.0
    %1543 = vmatmul.mubr.f32.gmra.mxu0 %v1473
    %v1544 = vpop.f32.mrf.mxu0
    %v1545 = vadd.f32 0.0, %v1544
    %v1546 = vpop.f32.mrf.mxu0
    %1547 = vmatprep.mubr.f32.mxu0 0.0
    %1548 = vmatmul.mubr.f32.gmra.mxu0 %v1476
    %v1549 = vpop.f32.mrf.mxu0
    %v1550 = vadd.f32 0.0, %v1549
    %v1551 = vpop.f32.mrf.mxu0
    %1552 = vdwg.mxu0
    %1553 = vst.msk [vmem:[#allocation3] sm:$0xff] %vm39, %v1545
    %1554 = vst.msk [vmem:[#allocation3 + $0x8] sm:$0xff] %vm39, %v1550
    // Predicated region
    $region22: #{llama_attention.1} parent=1 // pred_check
      _
    $region23: #{llama_attention.1} parent=1 // pred_check_branch
      %1556 = sbr.rel (0) target = $region25
    $region24: #{llama_attention.1} parent=1 // pred_region
      %s1558 = ssub.s32 256, 256
      %1559 = vsyncadd [#allocation4], %s1558
      %s1560 = sshll.u32 [#allocation3], 4
      %s1561 = int_to_ptr.vmem [resolvable:$true] %s1560
      %1566 = dma.vmem_to_hbm [thread:$0]  %s1561, 256, %s5, [#allocation4], 128, 128, 8
    $region25: #{llama_attention.1} parent=1 // pred_fallthru
      _
    // Predicated region
    $region26: #{llama_attention.1} parent=1 // pred_check
      _
    $region27: #{llama_attention.1} parent=1 // pred_check_branch
      %1568 = sbr.rel (0) target = $region29
    $region28: #{llama_attention.1} parent=1 // pred_region
      %1569 = dma.done [#allocation4], 256
    $region29: #{llama_attention.1} parent=1 // pred_fallthru
      _
    %1570 = vsyncpa [#allocation4], 1

</llo_original>
